<compile_context>
chip_gen: v6e
topology: v6e:2x2x1
jax: 0.10.0
libtpu: 0.0.40
codegen_flags: <defaults>
</compile_context>

<pallas_src>
import jax
import jax.numpy as jnp
from jax import lax
from jax.experimental import pallas as pl
from jax.experimental.pallas import tpu as pltpu


def _downsample_kernel(x_mid_ref, x_top_ref, x_bot_ref, w_ref, o_ref, pad_ref):
    # x_mid_ref: (1, TH, 4*Wh, C)   row tile; band m = 2j+k of dim 2 holds
    #                               x[2r+j, 2u+k, c] at offset u
    # x_top_ref: (1, 1, 4*Wh, C)    unfolded row just above the tile (clamped)
    # x_bot_ref: (1, 1, 4*Wh, C)    unfolded row just below the tile (clamped)
    # w_ref:     (3, 3, C, Co_pad)  0.25-scaled conv weight (HWIO, Co padded)
    # o_ref:     (1, TH, Wh, Co_pad)
    # pad_ref:   (TH+2, Wh+16, C) f32 scratch; data columns live at [8, 8+Wh)
    TH = o_ref.shape[1]
    Wh = o_ref.shape[2]
    Co_pad = o_ref.shape[3]
    C = pad_ref.shape[2]

    t = pl.program_id(1)
    nt = pl.num_programs(1)

    # ---- 2x2 average pool: 3 sublane-aligned VPU adds; 1/4 is in the weight.
    def pool(x):  # (..., 4*Wh, C) -> f32 (..., Wh, C)
        return (x[..., 0 * Wh:1 * Wh, :] + x[..., 1 * Wh:2 * Wh, :]
                + x[..., 2 * Wh:3 * Wh, :]
                + x[..., 3 * Wh:4 * Wh, :]).astype(jnp.float32)

    rs = pool(x_mid_ref[0])        # (TH, Wh, C)
    rt = pool(x_top_ref[0, 0])     # (Wh, C)
    rb = pool(x_bot_ref[0, 0])     # (Wh, C)

    zero_row = jnp.zeros_like(rt)
    rt = jnp.where(t > 0, rt, zero_row)        # zero pad at the image top
    rb = jnp.where(t < nt - 1, rb, zero_row)   # zero pad at the image bottom

    # ---- fill scratch: interior W write at sublane-aligned offset 8;
    #      only the thin W-pad column bands are zeroed (not the whole scratch).
    zpad = jnp.zeros((TH + 2, 8, C), jnp.float32)
    pad_ref[:, pl.ds(0, 8), :] = zpad
    pad_ref[:, pl.ds(8 + Wh, 8), :] = zpad
    pad_ref[0, pl.ds(8, Wh), :] = rt
    pad_ref[pl.ds(1, TH), pl.ds(8, Wh), :] = rs
    pad_ref[TH + 1, pl.ds(8, Wh), :] = rb

    # ---- 3x3 conv: 9 whole-slab matmuls (M = TH*Wh, K = C), one output store.
    acc = jnp.zeros((TH * Wh, Co_pad), jnp.float32)
    for dh in range(3):          # static, unrolled
        for dw in range(3):      # static, unrolled
            slab = pad_ref[pl.ds(dh, TH), pl.ds(7 + dw, Wh), :]   # (TH, Wh, C)
            acc = acc + jnp.dot(slab.reshape(TH * Wh, C), w_ref[dh, dw],
                                preferred_element_type=jnp.float32)
    o_ref[0] = acc.reshape(TH, Wh, Co_pad).astype(o_ref.dtype)


def _pick_row_tile(Hh, Wh, C, Co_pad):
    """Largest divisor of Hh whose per-step working set stays comfortably small."""
    budget = 6 * 1024 * 1024
    # per pooled row: dbl-buffered input (4*Wh*C), dbl-buffered output
    # (Wh*Co_pad), f32 scratch + pooled slab (~2*Wh*C), f32 accumulator.
    per_row = Wh * (48 * C + 16 * Co_pad) + 1
    max_rows = max(1, min(budget // per_row, max(1, 2048 // max(Wh, 1))))
    for d in range(min(Hh, max_rows), 0, -1):
        if Hh % d == 0:
            return d
    return 1


def downsample(x_nchw, w_oihw):
    """x_nchw: (B, C, H, W); w_oihw: (2*C, C, 3, 3). Returns (B, 2*C, H/2, W/2)."""
    B, C, H, W = x_nchw.shape
    Co = w_oihw.shape[0]
    assert H % 2 == 0 and W % 2 == 0, "even spatial dims expected"
    Hh, Wh = H // 2, W // 2
    Co_pad = 128 * pl.cdiv(Co, 128)            # lane-dense output channel dim

    # Weight: OIHW -> HWIO; fold the 1/4 pooling factor; pad Co to 128.
    w_hwio = jnp.transpose(w_oihw, (2, 3, 1, 0)).astype(jnp.float32)   # (3,3,C,Co)
    w2 = 0.25 * w_hwio
    w2 = jnp.pad(w2, ((0, 0), (0, 0), (0, 0), (0, Co_pad - Co)))       # (3,3,C,Co_pad)

    # Input: single XLA layout change (one HBM pass, replaces the NCHW->NHWC
    # transpose) that unfolds the 2x2 pooling window along one sublane axis:
    #   x5[b, r, (2j+k)*Wh + u, c] = x[b, c, 2r+j, 2u+k]
    x6 = x_nchw.reshape(B, C, Hh, 2, Wh, 2)
    x6 = jnp.transpose(x6, (0, 2, 3, 5, 4, 1))        # (B, Hh, 2, 2, Wh, C)
    x5 = x6.reshape(B, Hh, 4 * Wh, C)

    TH = _pick_row_tile(Hh, Wh, C, Co_pad)
    NT = Hh // TH

    out = pl.pallas_call(
        _downsample_kernel,
        out_shape=jax.ShapeDtypeStruct((B, Hh, Wh, Co_pad), x_nchw.dtype),
        grid_spec=pltpu.PrefetchScalarGridSpec(
            num_scalar_prefetch=0,
            grid=(B, NT),
            in_specs=[
                # row tile (TH pooled rows, 2x2 window unfolded along dim 2)
                pl.BlockSpec((1, TH, 4 * Wh, C),
                             lambda b, t: (b, t, 0, 0)),
                # halo: unfolded row above the tile (clamped; masked in-kernel)
                pl.BlockSpec((1, 1, 4 * Wh, C),
                             lambda b, t: (b, jnp.maximum(t * TH - 1, 0), 0, 0)),
                # halo: unfolded row below the tile (clamped; masked in-kernel)
                pl.BlockSpec((1, 1, 4 * Wh, C),
                             lambda b, t: (b, jnp.minimum((t + 1) * TH, Hh - 1), 0, 0)),
                # conv weight (whole array, block index constant -> stays resident)
                pl.BlockSpec((3, 3, C, Co_pad), lambda b, t: (0, 0, 0, 0)),
            ],
            out_specs=pl.BlockSpec((1, TH, Wh, Co_pad), lambda b, t: (b, t, 0, 0)),
            scratch_shapes=[pltpu.VMEM((TH + 2, Wh + 16, C), jnp.float32)],
        ),
        compiler_params=pltpu.CompilerParams(
            dimension_semantics=("parallel", "parallel")),
    )(x5, x5, x5, w2)

    out = out[..., :Co]                          # fuses with the transpose below
    return jnp.transpose(out, (0, 3, 1, 2))      # NHWC -> NCHW


if __name__ == "__main__":
    key = jax.random.PRNGKey(0)
    n_feat = 4
    B, H, W = 2, 16, 16

    kx, kw = jax.random.split(key)
    x = jax.random.normal(kx, (B, n_feat, H, W), jnp.float32)
    # PyTorch conv weight layout (Co, Ci, kh, kw).
    w_oihw = 0.1 * jax.random.normal(kw, (2 * n_feat, n_feat, 3, 3), jnp.float32)

    y = downsample(x, w_oihw)
    y = jax.block_until_ready(y)

    # Plain-JAX reference (bilinear 0.5x == 2x2 avg pool, then SAME 3x3 conv).
    x_nhwc = jnp.transpose(x, (0, 2, 3, 1))
    pooled = x_nhwc.reshape(B, H // 2, 2, W // 2, 2, n_feat).mean(axis=(2, 4))
    w_hwio = jnp.transpose(w_oihw, (2, 3, 1, 0))
    ref = lax.conv_general_dilated(
        pooled, w_hwio, window_strides=(1, 1), padding="SAME",
        dimension_numbers=("NHWC", "HWIO", "NHWC"))
    ref = jnp.transpose(ref, (0, 3, 1, 2))

    assert y.shape == (B, 2 * n_feat, H // 2, W // 2), y.shape
    assert jnp.allclose(y, ref, atol=1e-4, rtol=1e-4), \
        float(jnp.max(jnp.abs(y - ref)))
    print("KERNEL_OK")
</pallas_src>

<mosaic_0001>
module attributes {stable_mosaic.version = 11 : i64} {
  func.func @_downsample_kernel(%arg0: i32, %arg1: i32, %arg2: memref<1x8x32x4xf32, #tpu.memory_space<vmem>>, %arg3: memref<1x1x32x4xf32, #tpu.memory_space<vmem>>, %arg4: memref<1x1x32x4xf32, #tpu.memory_space<vmem>>, %arg5: memref<3x3x4x128xf32, #tpu.memory_space<vmem>>, %arg6: memref<1x8x8x128xf32, #tpu.memory_space<vmem>>, %arg7: memref<10x24x4xf32, #tpu.memory_space<vmem>>) attributes {dimension_semantics = [#tpu.dimension_semantics<parallel>, #tpu.dimension_semantics<parallel>], iteration_bounds = array<i64: 2, 1>, scalar_prefetch = 0 : i64, scratch_operands = 1 : i64, tpu.core_type = #tpu.core_type<tc>, window_params = [{transform_indices = @transform_0, window_bounds = array<i64: 1, 8, 32, 4>}, {transform_indices = @transform_1, window_bounds = array<i64: 1, 1, 32, 4>}, {transform_indices = @transform_2, window_bounds = array<i64: 1, 1, 32, 4>}, {pipeline_mode = #tpu.pipeline_mode<synchronous>, transform_indices = @transform_3, window_bounds = array<i64: 3, 3, 4, 128>}, {transform_indices = @transform_4, window_bounds = array<i64: 1, 8, 8, 128>}]} {
    %c0 = arith.constant 0 : index
    %c0_0 = arith.constant 0 : index
    %c0_1 = arith.constant 0 : index
    %c0_2 = arith.constant 0 : index
    %0 = vector.load %arg2[%c0, %c0_0, %c0_1, %c0_2] : memref<1x8x32x4xf32, #tpu.memory_space<vmem>>, vector<1x8x32x4xf32>
    %1 = vector.shape_cast %0 : vector<1x8x32x4xf32> to vector<8x32x4xf32>
    %2 = vector.extract_strided_slice %1 {offsets = [0, 0, 0], sizes = [8, 8, 4], strides = [1, 1, 1]} : vector<8x32x4xf32> to vector<8x8x4xf32>
    %3 = vector.extract_strided_slice %1 {offsets = [0, 8, 0], sizes = [8, 8, 4], strides = [1, 1, 1]} : vector<8x32x4xf32> to vector<8x8x4xf32>
    %4 = arith.addf %2, %3 : vector<8x8x4xf32>
    %5 = vector.extract_strided_slice %1 {offsets = [0, 16, 0], sizes = [8, 8, 4], strides = [1, 1, 1]} : vector<8x32x4xf32> to vector<8x8x4xf32>
    %6 = arith.addf %4, %5 : vector<8x8x4xf32>
    %7 = vector.extract_strided_slice %1 {offsets = [0, 24, 0], sizes = [8, 8, 4], strides = [1, 1, 1]} : vector<8x32x4xf32> to vector<8x8x4xf32>
    %8 = arith.addf %6, %7 : vector<8x8x4xf32>
    %c0_3 = arith.constant 0 : index
    %c0_4 = arith.constant 0 : index
    %c0_5 = arith.constant 0 : index
    %c0_6 = arith.constant 0 : index
    %9 = vector.load %arg3[%c0_3, %c0_4, %c0_5, %c0_6] : memref<1x1x32x4xf32, #tpu.memory_space<vmem>>, vector<1x1x32x4xf32>
    %10 = vector.shape_cast %9 : vector<1x1x32x4xf32> to vector<32x4xf32>
    %11 = vector.extract_strided_slice %10 {offsets = [0, 0], sizes = [8, 4], strides = [1, 1]} : vector<32x4xf32> to vector<8x4xf32>
    %12 = vector.extract_strided_slice %10 {offsets = [8, 0], sizes = [8, 4], strides = [1, 1]} : vector<32x4xf32> to vector<8x4xf32>
    %13 = arith.addf %11, %12 : vector<8x4xf32>
    %14 = vector.extract_strided_slice %10 {offsets = [16, 0], sizes = [8, 4], strides = [1, 1]} : vector<32x4xf32> to vector<8x4xf32>
    %15 = arith.addf %13, %14 : vector<8x4xf32>
    %16 = vector.extract_strided_slice %10 {offsets = [24, 0], sizes = [8, 4], strides = [1, 1]} : vector<32x4xf32> to vector<8x4xf32>
    %17 = arith.addf %15, %16 : vector<8x4xf32>
    %c0_7 = arith.constant 0 : index
    %c0_8 = arith.constant 0 : index
    %c0_9 = arith.constant 0 : index
    %c0_10 = arith.constant 0 : index
    %18 = vector.load %arg4[%c0_7, %c0_8, %c0_9, %c0_10] : memref<1x1x32x4xf32, #tpu.memory_space<vmem>>, vector<1x1x32x4xf32>
    %19 = vector.shape_cast %18 : vector<1x1x32x4xf32> to vector<32x4xf32>
    %20 = vector.extract_strided_slice %19 {offsets = [0, 0], sizes = [8, 4], strides = [1, 1]} : vector<32x4xf32> to vector<8x4xf32>
    %21 = vector.extract_strided_slice %19 {offsets = [8, 0], sizes = [8, 4], strides = [1, 1]} : vector<32x4xf32> to vector<8x4xf32>
    %22 = arith.addf %20, %21 : vector<8x4xf32>
    %23 = vector.extract_strided_slice %19 {offsets = [16, 0], sizes = [8, 4], strides = [1, 1]} : vector<32x4xf32> to vector<8x4xf32>
    %24 = arith.addf %22, %23 : vector<8x4xf32>
    %25 = vector.extract_strided_slice %19 {offsets = [24, 0], sizes = [8, 4], strides = [1, 1]} : vector<32x4xf32> to vector<8x4xf32>
    %26 = arith.addf %24, %25 : vector<8x4xf32>
    %cst = arith.constant 0.000000e+00 : f32
    %27 = vector.broadcast %cst : f32 to vector<8x4xf32>
    %c0_i32 = arith.constant 0 : i32
    %28 = arith.cmpi sgt, %arg1, %c0_i32 : i32
    %29 = arith.select %28, %17, %27 : vector<8x4xf32>
    %c0_i32_11 = arith.constant 0 : i32
    %30 = arith.cmpi slt, %arg1, %c0_i32_11 : i32
    %31 = arith.select %30, %26, %27 : vector<8x4xf32>
    %cst_12 = arith.constant 0.000000e+00 : f32
    %32 = vector.broadcast %cst_12 : f32 to vector<10x8x4xf32>
    %c0_13 = arith.constant 0 : index
    %c0_14 = arith.constant 0 : index
    %c0_15 = arith.constant 0 : index
    %33 = vector.load %arg7[%c0_13, %c0_14, %c0_15] : memref<10x24x4xf32, #tpu.memory_space<vmem>>, vector<10x8x4xf32>
    tpu.vector_store %arg7[%c0_13, %c0_14, %c0_15], %32 {strides = array<i32>} : memref<10x24x4xf32, #tpu.memory_space<vmem>>, vector<10x8x4xf32>,
    %c0_16 = arith.constant 0 : index
    %c16 = arith.constant 16 : index
    %c0_17 = arith.constant 0 : index
    %34 = vector.load %arg7[%c0_16, %c16, %c0_17] : memref<10x24x4xf32, #tpu.memory_space<vmem>>, vector<10x8x4xf32>
    tpu.vector_store %arg7[%c0_16, %c16, %c0_17], %32 {strides = array<i32>} : memref<10x24x4xf32, #tpu.memory_space<vmem>>, vector<10x8x4xf32>,
    %c0_18 = arith.constant 0 : index
    %c8 = arith.constant 8 : index
    %c0_19 = arith.constant 0 : index
    %35 = vector.load %arg7[%c0_18, %c8, %c0_19] : memref<10x24x4xf32, #tpu.memory_space<vmem>>, vector<1x8x4xf32>
    %36 = vector.shape_cast %35 : vector<1x8x4xf32> to vector<8x4xf32>
    %37 = vector.shape_cast %29 : vector<8x4xf32> to vector<1x8x4xf32>
    tpu.vector_store %arg7[%c0_18, %c8, %c0_19], %37 {strides = array<i32>} : memref<10x24x4xf32, #tpu.memory_space<vmem>>, vector<1x8x4xf32>,
    %c1 = arith.constant 1 : index
    %c8_20 = arith.constant 8 : index
    %c0_21 = arith.constant 0 : index
    %38 = vector.load %arg7[%c1, %c8_20, %c0_21] : memref<10x24x4xf32, #tpu.memory_space<vmem>>, vector<8x8x4xf32>
    tpu.vector_store %arg7[%c1, %c8_20, %c0_21], %8 {strides = array<i32>} : memref<10x24x4xf32, #tpu.memory_space<vmem>>, vector<8x8x4xf32>,
    %c9 = arith.constant 9 : index
    %c8_22 = arith.constant 8 : index
    %c0_23 = arith.constant 0 : index
    %39 = vector.load %arg7[%c9, %c8_22, %c0_23] : memref<10x24x4xf32, #tpu.memory_space<vmem>>, vector<1x8x4xf32>
    %40 = vector.shape_cast %39 : vector<1x8x4xf32> to vector<8x4xf32>
    %41 = vector.shape_cast %31 : vector<8x4xf32> to vector<1x8x4xf32>
    tpu.vector_store %arg7[%c9, %c8_22, %c0_23], %41 {strides = array<i32>} : memref<10x24x4xf32, #tpu.memory_space<vmem>>, vector<1x8x4xf32>,
    %cst_24 = arith.constant 0.000000e+00 : f32
    %42 = vector.broadcast %cst_24 : f32 to vector<64x128xf32>
    %c0_25 = arith.constant 0 : index
    %c7 = arith.constant 7 : index
    %c0_26 = arith.constant 0 : index
    %43 = vector.load %arg7[%c0_25, %c7, %c0_26] : memref<10x24x4xf32, #tpu.memory_space<vmem>>, vector<8x8x4xf32>
    %44 = vector.shape_cast %43 : vector<8x8x4xf32> to vector<64x4xf32>
    %c0_27 = arith.constant 0 : index
    %c0_28 = arith.constant 0 : index
    %c0_29 = arith.constant 0 : index
    %c0_30 = arith.constant 0 : index
    %45 = vector.load %arg5[%c0_27, %c0_28, %c0_29, %c0_30] : memref<3x3x4x128xf32, #tpu.memory_space<vmem>>, vector<1x1x4x128xf32>
    %46 = vector.shape_cast %45 : vector<1x1x4x128xf32> to vector<4x128xf32>
    %cst_31 = arith.constant dense<0.000000e+00> : vector<64x128xf32>
    %47 = tpu.matmul %44, %46, %cst_31 {dimension_numbers = #tpu.dot_dimension_numbers<[1], [0], [0], [1], [0, 0, 1, 1], [], []>} : vector<64x4xf32>, vector<4x128xf32>, vector<64x128xf32> -> vector<64x128xf32>
    %48 = arith.addf %42, %47 : vector<64x128xf32>
    %c0_32 = arith.constant 0 : index
    %c8_33 = arith.constant 8 : index
    %c0_34 = arith.constant 0 : index
    %49 = vector.load %arg7[%c0_32, %c8_33, %c0_34] : memref<10x24x4xf32, #tpu.memory_space<vmem>>, vector<8x8x4xf32>
    %50 = vector.shape_cast %49 : vector<8x8x4xf32> to vector<64x4xf32>
    %c0_35 = arith.constant 0 : index
    %c1_36 = arith.constant 1 : index
    %c0_37 = arith.constant 0 : index
    %c0_38 = arith.constant 0 : index
    %51 = vector.load %arg5[%c0_35, %c1_36, %c0_37, %c0_38] : memref<3x3x4x128xf32, #tpu.memory_space<vmem>>, vector<1x1x4x128xf32>
    %52 = vector.shape_cast %51 : vector<1x1x4x128xf32> to vector<4x128xf32>
    %cst_39 = arith.constant dense<0.000000e+00> : vector<64x128xf32>
    %53 = tpu.matmul %50, %52, %cst_39 {dimension_numbers = #tpu.dot_dimension_numbers<[1], [0], [0], [1], [0, 0, 1, 1], [], []>} : vector<64x4xf32>, vector<4x128xf32>, vector<64x128xf32> -> vector<64x128xf32>
    %54 = arith.addf %48, %53 : vector<64x128xf32>
    %c0_40 = arith.constant 0 : index
    %c9_41 = arith.constant 9 : index
    %c0_42 = arith.constant 0 : index
    %55 = vector.load %arg7[%c0_40, %c9_41, %c0_42] : memref<10x24x4xf32, #tpu.memory_space<vmem>>, vector<8x8x4xf32>
    %56 = vector.shape_cast %55 : vector<8x8x4xf32> to vector<64x4xf32>
    %c0_43 = arith.constant 0 : index
    %c2 = arith.constant 2 : index
    %c0_44 = arith.constant 0 : index
    %c0_45 = arith.constant 0 : index
    %57 = vector.load %arg5[%c0_43, %c2, %c0_44, %c0_45] : memref<3x3x4x128xf32, #tpu.memory_space<vmem>>, vector<1x1x4x128xf32>
    %58 = vector.shape_cast %57 : vector<1x1x4x128xf32> to vector<4x128xf32>
    %cst_46 = arith.constant dense<0.000000e+00> : vector<64x128xf32>
    %59 = tpu.matmul %56, %58, %cst_46 {dimension_numbers = #tpu.dot_dimension_numbers<[1], [0], [0], [1], [0, 0, 1, 1], [], []>} : vector<64x4xf32>, vector<4x128xf32>, vector<64x128xf32> -> vector<64x128xf32>
    %60 = arith.addf %54, %59 : vector<64x128xf32>
    %c1_47 = arith.constant 1 : index
    %c7_48 = arith.constant 7 : index
    %c0_49 = arith.constant 0 : index
    %61 = vector.load %arg7[%c1_47, %c7_48, %c0_49] : memref<10x24x4xf32, #tpu.memory_space<vmem>>, vector<8x8x4xf32>
    %62 = vector.shape_cast %61 : vector<8x8x4xf32> to vector<64x4xf32>
    %c1_50 = arith.constant 1 : index
    %c0_51 = arith.constant 0 : index
    %c0_52 = arith.constant 0 : index
    %c0_53 = arith.constant 0 : index
    %63 = vector.load %arg5[%c1_50, %c0_51, %c0_52, %c0_53] : memref<3x3x4x128xf32, #tpu.memory_space<vmem>>, vector<1x1x4x128xf32>
    %64 = vector.shape_cast %63 : vector<1x1x4x128xf32> to vector<4x128xf32>
    %cst_54 = arith.constant dense<0.000000e+00> : vector<64x128xf32>
    %65 = tpu.matmul %62, %64, %cst_54 {dimension_numbers = #tpu.dot_dimension_numbers<[1], [0], [0], [1], [0, 0, 1, 1], [], []>} : vector<64x4xf32>, vector<4x128xf32>, vector<64x128xf32> -> vector<64x128xf32>
    %66 = arith.addf %60, %65 : vector<64x128xf32>
    %c1_55 = arith.constant 1 : index
    %c8_56 = arith.constant 8 : index
    %c0_57 = arith.constant 0 : index
    %67 = vector.load %arg7[%c1_55, %c8_56, %c0_57] : memref<10x24x4xf32, #tpu.memory_space<vmem>>, vector<8x8x4xf32>
    %68 = vector.shape_cast %67 : vector<8x8x4xf32> to vector<64x4xf32>
    %c1_58 = arith.constant 1 : index
    %c1_59 = arith.constant 1 : index
    %c0_60 = arith.constant 0 : index
    %c0_61 = arith.constant 0 : index
    %69 = vector.load %arg5[%c1_58, %c1_59, %c0_60, %c0_61] : memref<3x3x4x128xf32, #tpu.memory_space<vmem>>, vector<1x1x4x128xf32>
    %70 = vector.shape_cast %69 : vector<1x1x4x128xf32> to vector<4x128xf32>
    %cst_62 = arith.constant dense<0.000000e+00> : vector<64x128xf32>
    %71 = tpu.matmul %68, %70, %cst_62 {dimension_numbers = #tpu.dot_dimension_numbers<[1], [0], [0], [1], [0, 0, 1, 1], [], []>} : vector<64x4xf32>, vector<4x128xf32>, vector<64x128xf32> -> vector<64x128xf32>
    %72 = arith.addf %66, %71 : vector<64x128xf32>
    %c1_63 = arith.constant 1 : index
    %c9_64 = arith.constant 9 : index
    %c0_65 = arith.constant 0 : index
    %73 = vector.load %arg7[%c1_63, %c9_64, %c0_65] : memref<10x24x4xf32, #tpu.memory_space<vmem>>, vector<8x8x4xf32>
    %74 = vector.shape_cast %73 : vector<8x8x4xf32> to vector<64x4xf32>
    %c1_66 = arith.constant 1 : index
    %c2_67 = arith.constant 2 : index
    %c0_68 = arith.constant 0 : index
    %c0_69 = arith.constant 0 : index
    %75 = vector.load %arg5[%c1_66, %c2_67, %c0_68, %c0_69] : memref<3x3x4x128xf32, #tpu.memory_space<vmem>>, vector<1x1x4x128xf32>
    %76 = vector.shape_cast %75 : vector<1x1x4x128xf32> to vector<4x128xf32>
    %cst_70 = arith.constant dense<0.000000e+00> : vector<64x128xf32>
    %77 = tpu.matmul %74, %76, %cst_70 {dimension_numbers = #tpu.dot_dimension_numbers<[1], [0], [0], [1], [0, 0, 1, 1], [], []>} : vector<64x4xf32>, vector<4x128xf32>, vector<64x128xf32> -> vector<64x128xf32>
    %78 = arith.addf %72, %77 : vector<64x128xf32>
    %c2_71 = arith.constant 2 : index
    %c7_72 = arith.constant 7 : index
    %c0_73 = arith.constant 0 : index
    %79 = vector.load %arg7[%c2_71, %c7_72, %c0_73] : memref<10x24x4xf32, #tpu.memory_space<vmem>>, vector<8x8x4xf32>
    %80 = vector.shape_cast %79 : vector<8x8x4xf32> to vector<64x4xf32>
    %c2_74 = arith.constant 2 : index
    %c0_75 = arith.constant 0 : index
    %c0_76 = arith.constant 0 : index
    %c0_77 = arith.constant 0 : index
    %81 = vector.load %arg5[%c2_74, %c0_75, %c0_76, %c0_77] : memref<3x3x4x128xf32, #tpu.memory_space<vmem>>, vector<1x1x4x128xf32>
    %82 = vector.shape_cast %81 : vector<1x1x4x128xf32> to vector<4x128xf32>
    %cst_78 = arith.constant dense<0.000000e+00> : vector<64x128xf32>
    %83 = tpu.matmul %80, %82, %cst_78 {dimension_numbers = #tpu.dot_dimension_numbers<[1], [0], [0], [1], [0, 0, 1, 1], [], []>} : vector<64x4xf32>, vector<4x128xf32>, vector<64x128xf32> -> vector<64x128xf32>
    %84 = arith.addf %78, %83 : vector<64x128xf32>
    %c2_79 = arith.constant 2 : index
    %c8_80 = arith.constant 8 : index
    %c0_81 = arith.constant 0 : index
    %85 = vector.load %arg7[%c2_79, %c8_80, %c0_81] : memref<10x24x4xf32, #tpu.memory_space<vmem>>, vector<8x8x4xf32>
    %86 = vector.shape_cast %85 : vector<8x8x4xf32> to vector<64x4xf32>
    %c2_82 = arith.constant 2 : index
    %c1_83 = arith.constant 1 : index
    %c0_84 = arith.constant 0 : index
    %c0_85 = arith.constant 0 : index
    %87 = vector.load %arg5[%c2_82, %c1_83, %c0_84, %c0_85] : memref<3x3x4x128xf32, #tpu.memory_space<vmem>>, vector<1x1x4x128xf32>
    %88 = vector.shape_cast %87 : vector<1x1x4x128xf32> to vector<4x128xf32>
    %cst_86 = arith.constant dense<0.000000e+00> : vector<64x128xf32>
    %89 = tpu.matmul %86, %88, %cst_86 {dimension_numbers = #tpu.dot_dimension_numbers<[1], [0], [0], [1], [0, 0, 1, 1], [], []>} : vector<64x4xf32>, vector<4x128xf32>, vector<64x128xf32> -> vector<64x128xf32>
    %90 = arith.addf %84, %89 : vector<64x128xf32>
    %c2_87 = arith.constant 2 : index
    %c9_88 = arith.constant 9 : index
    %c0_89 = arith.constant 0 : index
    %91 = vector.load %arg7[%c2_87, %c9_88, %c0_89] : memref<10x24x4xf32, #tpu.memory_space<vmem>>, vector<8x8x4xf32>
    %92 = vector.shape_cast %91 : vector<8x8x4xf32> to vector<64x4xf32>
    %c2_90 = arith.constant 2 : index
    %c2_91 = arith.constant 2 : index
    %c0_92 = arith.constant 0 : index
    %c0_93 = arith.constant 0 : index
    %93 = vector.load %arg5[%c2_90, %c2_91, %c0_92, %c0_93] : memref<3x3x4x128xf32, #tpu.memory_space<vmem>>, vector<1x1x4x128xf32>
    %94 = vector.shape_cast %93 : vector<1x1x4x128xf32> to vector<4x128xf32>
    %cst_94 = arith.constant dense<0.000000e+00> : vector<64x128xf32>
    %95 = tpu.matmul %92, %94, %cst_94 {dimension_numbers = #tpu.dot_dimension_numbers<[1], [0], [0], [1], [0, 0, 1, 1], [], []>} : vector<64x4xf32>, vector<4x128xf32>, vector<64x128xf32> -> vector<64x128xf32>
    %96 = arith.addf %90, %95 : vector<64x128xf32>
    %97 = vector.shape_cast %96 : vector<64x128xf32> to vector<8x8x128xf32>
    %c0_95 = arith.constant 0 : index
    %c0_96 = arith.constant 0 : index
    %c0_97 = arith.constant 0 : index
    %c0_98 = arith.constant 0 : index
    %98 = vector.load %arg6[%c0_95, %c0_96, %c0_97, %c0_98] : memref<1x8x8x128xf32, #tpu.memory_space<vmem>>, vector<1x8x8x128xf32>
    %99 = vector.shape_cast %98 : vector<1x8x8x128xf32> to vector<8x8x128xf32>
    %100 = vector.shape_cast %97 : vector<8x8x128xf32> to vector<1x8x8x128xf32>
    tpu.vector_store %arg6[%c0_95, %c0_96, %c0_97, %c0_98], %100 {strides = array<i32>} : memref<1x8x8x128xf32, #tpu.memory_space<vmem>>, vector<1x8x8x128xf32>,
    return
  }
  func.func @transform_0(%arg0: i32, %arg1: i32) -> (i32, i32, i32, i32) {
    %c0_i32 = arith.constant 0 : i32
    %c0_i32_0 = arith.constant 0 : i32
    %c0_i32_1 = arith.constant 0 : i32
    return %arg0, %arg1, %c0_i32, %c0_i32_0 : i32, i32, i32, i32
  }
  func.func @transform_1(%arg0: i32, %arg1: i32) -> (i32, i32, i32, i32) {
    %c8_i32 = arith.constant 8 : i32
    %0 = arith.muli %arg1, %c8_i32 : i32
    %c1_i32 = arith.constant 1 : i32
    %1 = arith.subi %0, %c1_i32 : i32
    %c0_i32 = arith.constant 0 : i32
    %2 = arith.maxsi %1, %c0_i32 : i32
    %c0_i32_0 = arith.constant 0 : i32
    %c0_i32_1 = arith.constant 0 : i32
    %c0_i32_2 = arith.constant 0 : i32
    return %arg0, %2, %c0_i32_0, %c0_i32_1 : i32, i32, i32, i32
  }
  func.func @transform_2(%arg0: i32, %arg1: i32) -> (i32, i32, i32, i32) {
    %c1_i32 = arith.constant 1 : i32
    %0 = arith.addi %arg1, %c1_i32 : i32
    %c8_i32 = arith.constant 8 : i32
    %1 = arith.muli %0, %c8_i32 : i32
    %c7_i32 = arith.constant 7 : i32
    %2 = arith.minsi %1, %c7_i32 : i32
    %c0_i32 = arith.constant 0 : i32
    %c0_i32_0 = arith.constant 0 : i32
    %c0_i32_1 = arith.constant 0 : i32
    return %arg0, %2, %c0_i32, %c0_i32_0 : i32, i32, i32, i32
  }
  func.func @transform_3(%arg0: i32, %arg1: i32) -> (i32, i32, i32, i32) {
    %c0_i32 = arith.constant 0 : i32
    %c0_i32_0 = arith.constant 0 : i32
    %c0_i32_1 = arith.constant 0 : i32
    %c0_i32_2 = arith.constant 0 : i32
    %c0_i32_3 = arith.constant 0 : i32
    return %c0_i32, %c0_i32_0, %c0_i32_1, %c0_i32_2 : i32, i32, i32, i32
  }
  func.func @transform_4(%arg0: i32, %arg1: i32) -> (i32, i32, i32, i32) {
    %c0_i32 = arith.constant 0 : i32
    %c0_i32_0 = arith.constant 0 : i32
    %c0_i32_1 = arith.constant 0 : i32
    return %arg0, %arg1, %c0_i32, %c0_i32_0 : i32, i32, i32, i32
  }
}

</mosaic_0001>

<llo_original>
// kernel: tpu_custom_call.1
$region0: #{tpu_custom_call.1}
  #allocation0 [shape = 'u32[]', space=smem, size = 0x4, offset = 0x4, fixed_abs, tag = 'smem constant byte address 0x4 - core index']
  #allocation1 [shape = 'u32[144,128]{1,0:T(1,128)}', space=vmem, size = 0x12000, scoped, tag = 'internal scratch']
  #allocation2 [shape = 'f32[10,24,4]{2,1,0:T(8,128)}', space=vmem, size = 0x1e000, scoped, tag = 'scratch operand']
  %s0 = inlined_call_operand.vmem [shape: f32[2,8,32,4], index: 0, kind: input, shape index: {}]
  %s1 = inlined_call_operand.vmem [shape: f32[2,8,32,4], index: 1, kind: input, shape index: {}]
  %s2 = inlined_call_operand.vmem [shape: f32[2,8,32,4], index: 2, kind: input, shape index: {}]
  %s3 = inlined_call_operand.vmem [shape: f32[3,3,4,128], index: 3, kind: input, shape index: {}]
  %s4 = inlined_call_operand.hbm [shape: f32[2,8,8,128], index: 4, kind: output, shape index: {}]
  %s5 = sld [smem:[#allocation0]]
  $region49: #{tpu_custom_call.1} parent=0
    _
  %s7 = ssub.s32 1, %s5
  %s8 = scalar_select 0, %s7, %s5
  $region1: #{tpu_custom_call.1} parent=0
    #allocation3 [shape = 'u8[65536]{0}', space=vmem, size = 0x10000, scoped, tag = 'output window, operand 0']
    #allocation4 [shape = 's32[2]{0}', space=sflag, size = 0x8, scoped, tag = 'scoped memory for tpu_custom_call.1']
    %9 = vsyncpa [#allocation4], 0
    %s10 = scalar_lea.sflag [#allocation4], 1
    %11 = vsyncpa %s10, 0
    loop: start=0, step=1, limit=4
    $region2: #{tpu_custom_call.1} parent=1 // loop_pre_header
      _
    $region3: #{tpu_custom_call.1} parent=1 // loop_header
      %s13 = sphi 0, %s17
      %p14 = scmp.ge.s32.totalorder %s13, 4
      %s20 = sphi 0, %s32
      %s21 = sphi 0, %s28
      %s22 = sphi 0, %s20
      %s23 = sphi 0, %s21
      %s24 = sphi 0, %s22
      %s25 = sphi 0, %s23
      %s37 = sphi 0, %s39
      %s40 = sphi 0, %s37
      %s41 = sphi 0, %s40
      %s57 = sphi 0, %s41
      %s73 = sphi 0, %s75
      %s76 = sphi 0, %s73
      %s77 = sphi 0, %s76
      %s93 = sphi 0, %s77
      %s109 = sphi 0, %s111
      %s112 = sphi 0, %s109
      %s113 = sphi 0, %s112
      %s129 = sphi 0, %s113
      %s133 = sphi 0, %s133
      %s135 = sphi 0, %s133
      %s136 = sphi 0, %s135
      %s150 = sphi 0, %s136
      %s158 = sphi 0, %s160
      %s161 = sphi 0, %s158
      %s162 = sphi 0, %s161
      %s178 = sphi 0, %s162
    $region4: #{tpu_custom_call.1} parent=1 // loop_header_branch
      %16 = sbr.rel (%p14) target = $region8
    $region5: #{tpu_custom_call.1} parent=1 // loop_body
      %s18 = ssub.s32 %s13, 1
      %s19 = ssub.s32 %s13, 2
      %s26 = sadd.s32 1, %s21
      %p27 = scmp.ge.s32.totalorder %s26, 1
      %s28 = scalar_select %p27, 0, %s26
      %s29 = sadd.s32 1, %s20
      %s30 = scalar_select %p27, %s29, %s20
      %p31 = scmp.ge.s32.totalorder %s30, 2
      %s32 = scalar_select %p31, 0, %s30
      %s33 = ssub.s32 %s20, %s32
      %s34 = ssub.s32 %s21, %s28
      %s35 = sor.u32 %s33, %s34
      %p36 = scmp.eq.s32.totalorder %s35, 0
      %s38 = sadd.s32 %s37, 1
      %s39 = scalar_select %p36, %s37, %s38
      %p42 = pneg %p36
      %p43 = scmp.eq.s32.totalorder %s13, 1
      %p44 = por %p42, %p43
      %p45 = scmp.ne.s32.totalorder %s37, %s40
      %p46 = scmp.eq.s32.totalorder %s13, 0
      %p47 = por %p45, %p46
      %p48 = scmp.ne.s32.totalorder %s37, %s40
      %p49 = scmp.eq.s32.totalorder %s18, 1
      %p50 = por %p48, %p49
      %p51 = scmp.ne.s32.totalorder %s40, %s41
      %p52 = scmp.eq.s32.totalorder %s18, 0
      %p53 = por %p51, %p52
      %p54 = scmp.ne.s32.totalorder %s40, %s41
      %p55 = scmp.eq.s32.totalorder %s19, 1
      %p56 = por %p54, %p55
      %p58 = scmp.ne.s32.totalorder %s41, %s57
      %p59 = scmp.eq.s32.totalorder %s19, 0
      %p60 = por %p58, %p59
      %s61 = smul.u32 %s21, 8
      %s62 = ssub.s32 %s61, 1
      %p63 = scmp.gt.s32.totalorder %s62, 0
      %s64 = scalar_select %p63, %s62, 0
      %s65 = smul.u32 %s28, 8
      %s66 = ssub.s32 %s65, 1
      %p67 = scmp.gt.s32.totalorder %s66, 0
      %s68 = scalar_select %p67, %s66, 0
      %s69 = ssub.s32 %s20, %s32
      %s70 = ssub.s32 %s64, %s68
      %s71 = sor.u32 %s69, %s70
      %p72 = scmp.eq.s32.totalorder %s71, 0
      %s74 = sadd.s32 %s73, 1
      %s75 = scalar_select %p72, %s73, %s74
      %p78 = pneg %p72
      %p79 = scmp.eq.s32.totalorder %s13, 1
      %p80 = por %p78, %p79
      %p81 = scmp.ne.s32.totalorder %s73, %s76
      %p82 = scmp.eq.s32.totalorder %s13, 0
      %p83 = por %p81, %p82
      %p84 = scmp.ne.s32.totalorder %s73, %s76
      %p85 = scmp.eq.s32.totalorder %s18, 1
      %p86 = por %p84, %p85
      %p87 = scmp.ne.s32.totalorder %s76, %s77
      %p88 = scmp.eq.s32.totalorder %s18, 0
      %p89 = por %p87, %p88
      %p90 = scmp.ne.s32.totalorder %s76, %s77
      %p91 = scmp.eq.s32.totalorder %s19, 1
      %p92 = por %p90, %p91
      %p94 = scmp.ne.s32.totalorder %s77, %s93
      %p95 = scmp.eq.s32.totalorder %s19, 0
      %p96 = por %p94, %p95
      %s97 = sadd.s32 %s21, 1
      %s98 = smul.u32 %s97, 8
      %p99 = scmp.lt.s32.totalorder %s98, 7
      %s100 = scalar_select %p99, %s98, 7
      %s101 = sadd.s32 %s28, 1
      %s102 = smul.u32 %s101, 8
      %p103 = scmp.lt.s32.totalorder %s102, 7
      %s104 = scalar_select %p103, %s102, 7
      %s105 = ssub.s32 %s20, %s32
      %s106 = ssub.s32 %s100, %s104
      %s107 = sor.u32 %s105, %s106
      %p108 = scmp.eq.s32.totalorder %s107, 0
      %s110 = sadd.s32 %s109, 1
      %s111 = scalar_select %p108, %s109, %s110
      %p114 = pneg %p108
      %p115 = scmp.eq.s32.totalorder %s13, 1
      %p116 = por %p114, %p115
      %p117 = scmp.ne.s32.totalorder %s109, %s112
      %p118 = scmp.eq.s32.totalorder %s13, 0
      %p119 = por %p117, %p118
      %p120 = scmp.ne.s32.totalorder %s109, %s112
      %p121 = scmp.eq.s32.totalorder %s18, 1
      %p122 = por %p120, %p121
      %p123 = scmp.ne.s32.totalorder %s112, %s113
      %p124 = scmp.eq.s32.totalorder %s18, 0
      %p125 = por %p123, %p124
      %p126 = scmp.ne.s32.totalorder %s112, %s113
      %p127 = scmp.eq.s32.totalorder %s19, 1
      %p128 = por %p126, %p127
      %p130 = scmp.ne.s32.totalorder %s113, %s129
      %p131 = scmp.eq.s32.totalorder %s19, 0
      %p132 = por %p130, %p131
      %s134 = sadd.s32 %s133, 1
      %p137 = scmp.eq.s32.totalorder %s13, 1
      %p138 = scmp.ne.s32.totalorder %s133, %s135
      %p139 = scmp.eq.s32.totalorder %s13, 0
      %p140 = por %p138, %p139
      %p141 = scmp.ne.s32.totalorder %s133, %s135
      %p142 = scmp.eq.s32.totalorder %s18, 1
      %p143 = por %p141, %p142
      %p144 = scmp.ne.s32.totalorder %s135, %s136
      %p145 = scmp.eq.s32.totalorder %s18, 0
      %p146 = por %p144, %p145
      %p147 = scmp.ne.s32.totalorder %s135, %s136
      %p148 = scmp.eq.s32.totalorder %s19, 1
      %p149 = por %p147, %p148
      %p151 = scmp.ne.s32.totalorder %s136, %s150
      %p152 = scmp.eq.s32.totalorder %s19, 0
      %p153 = por %p151, %p152
      %s154 = ssub.s32 %s20, %s32
      %s155 = ssub.s32 %s21, %s28
      %s156 = sor.u32 %s154, %s155
      %p157 = scmp.eq.s32.totalorder %s156, 0
      %s159 = sadd.s32 %s158, 1
      %s160 = scalar_select %p157, %s158, %s159
      %p163 = pneg %p157
      %p164 = scmp.eq.s32.totalorder %s13, 1
      %p165 = por %p163, %p164
      %p166 = scmp.ne.s32.totalorder %s158, %s161
      %p167 = scmp.eq.s32.totalorder %s13, 0
      %p168 = por %p166, %p167
      %p169 = scmp.ne.s32.totalorder %s158, %s161
      %p170 = scmp.eq.s32.totalorder %s18, 1
      %p171 = por %p169, %p170
      %p172 = scmp.ne.s32.totalorder %s161, %s162
      %p173 = scmp.eq.s32.totalorder %s18, 0
      %p174 = por %p172, %p173
      %p175 = scmp.ne.s32.totalorder %s161, %s162
      %p176 = scmp.eq.s32.totalorder %s19, 1
      %p177 = por %p175, %p176
      %p179 = scmp.ne.s32.totalorder %s162, %s178
      %p180 = scmp.eq.s32.totalorder %s19, 0
      %p181 = por %p179, %p180
      %p182 = scmp.le.s32.totalorder 1, %s13
      %p183 = scmp.lt.s32.totalorder %s13, 3
      %p184 = pnand %p182, %p183
      %p185 = pneg %p184
      // Predicated region
      $region9: #{tpu_custom_call.1} parent=5 // pred_check
        _
      $region10: #{tpu_custom_call.1} parent=5 // pred_check_branch
        %187 = sbr.rel (%p184) target = $region12
      $region11: #{tpu_custom_call.1} parent=5 // pred_region
        %s188 = ssub.s32 %s13, 1
        // Predicated region
        $region13: #{tpu_custom_call.1} parent=11 // pred_check
          %p189 = pneg %p146
        $region14: #{tpu_custom_call.1} parent=11 // pred_check_branch
          %191 = sbr.rel (%p189) target = $region16
        $region15: #{tpu_custom_call.1} parent=11 // pred_region
          _
        $region16: #{tpu_custom_call.1} parent=11 // pred_fallthru
          _
      $region12: #{tpu_custom_call.1} parent=5 // pred_fallthru
        _
      %p192 = scmp.lt.s32.totalorder %s13, 2
      // Predicated region
      $region17: #{tpu_custom_call.1} parent=5 // pred_check
        %p193 = pneg %p192
      $region18: #{tpu_custom_call.1} parent=5 // pred_check_branch
        %195 = sbr.rel (%p193) target = $region20
      $region19: #{tpu_custom_call.1} parent=5 // pred_region
        // Predicated region
        $region21: #{tpu_custom_call.1} parent=19 // pred_check
          %p196 = pneg %p47
        $region22: #{tpu_custom_call.1} parent=19 // pred_check_branch
          %198 = sbr.rel (%p196) target = $region24
        $region23: #{tpu_custom_call.1} parent=19 // pred_region
          %s199 = smul.u32 8, %s21
          %p200 = scmp.lt.s32.totalorder %s20, 1
          %s201 = scalar_select %p200, %s20, 1
          %p202 = scmp.lt.s32.totalorder %s199, 7
          %s203 = scalar_select %p202, %s199, 7
          %s204 = smul.addr %s203, 4
          %s205 = smul.addr %s201, 32
          %s206 = sadd.s32 %s204, %s205
          %s207 = smul.addr %s206, 8
          %s208 = scalar_lea.vmem %s0, %s207
          %s209 = smul.u32 8, %s21
        $region24: #{tpu_custom_call.1} parent=19 // pred_fallthru
          _
        // Predicated region
        $region25: #{tpu_custom_call.1} parent=19 // pred_check
          %p210 = pneg %p83
        $region26: #{tpu_custom_call.1} parent=19 // pred_check_branch
          %212 = sbr.rel (%p210) target = $region28
        $region27: #{tpu_custom_call.1} parent=19 // pred_region
          %s213 = smul.u32 %s21, 8
          %s214 = ssub.s32 %s213, 1
          %p215 = scmp.gt.s32.totalorder %s214, 0
          %s216 = scalar_select %p215, %s214, 0
          %p217 = scmp.lt.s32.totalorder %s20, 1
          %s218 = scalar_select %p217, %s20, 1
          %p219 = scmp.lt.s32.totalorder %s216, 7
          %s220 = scalar_select %p219, %s216, 7
          %s221 = smul.addr %s220, 4
          %s222 = smul.addr %s218, 32
          %s223 = sadd.s32 %s221, %s222
          %s224 = smul.addr %s223, 8
          %s225 = scalar_lea.vmem %s1, %s224
          %s226 = smul.u32 %s21, 8
          %s227 = ssub.s32 %s226, 1
          %p228 = scmp.gt.s32.totalorder %s227, 0
          %s229 = scalar_select %p228, %s227, 0
        $region28: #{tpu_custom_call.1} parent=19 // pred_fallthru
          _
        // Predicated region
        $region29: #{tpu_custom_call.1} parent=19 // pred_check
          %p230 = pneg %p119
        $region30: #{tpu_custom_call.1} parent=19 // pred_check_branch
          %232 = sbr.rel (%p230) target = $region32
        $region31: #{tpu_custom_call.1} parent=19 // pred_region
          %s233 = sadd.s32 %s21, 1
          %s234 = smul.u32 %s233, 8
          %p235 = scmp.lt.s32.totalorder %s234, 7
          %s236 = scalar_select %p235, %s234, 7
          %p237 = scmp.lt.s32.totalorder %s20, 1
          %s238 = scalar_select %p237, %s20, 1
          %p239 = scmp.lt.s32.totalorder %s236, 7
          %s240 = scalar_select %p239, %s236, 7
          %s241 = smul.addr %s240, 4
          %s242 = smul.addr %s238, 32
          %s243 = sadd.s32 %s241, %s242
          %s244 = smul.addr %s243, 8
          %s245 = scalar_lea.vmem %s2, %s244
          %s246 = sadd.s32 %s21, 1
          %s247 = smul.u32 %s246, 8
          %p248 = scmp.lt.s32.totalorder %s247, 7
          %s249 = scalar_select %p248, %s247, 7
        $region32: #{tpu_custom_call.1} parent=19 // pred_fallthru
          _
      $region20: #{tpu_custom_call.1} parent=5 // pred_fallthru
        _
      %p250 = scmp.le.s32.totalorder 1, %s13
      %p251 = scmp.lt.s32.totalorder %s13, 3
      %p252 = pnand %p250, %p251
      %p253 = pneg %p252
      // Predicated region
      $region33: #{tpu_custom_call.1} parent=5 // pred_check
        _
      $region34: #{tpu_custom_call.1} parent=5 // pred_check_branch
        %255 = sbr.rel (%p252) target = $region36
      $region35: #{tpu_custom_call.1} parent=5 // pred_region
        %s256 = ssub.s32 %s13, 1
        %s257 = smul.u32 8, %s23
        %p258 = scmp.lt.s32.totalorder %s22, 1
        %s259 = scalar_select %p258, %s22, 1
        %p260 = scmp.lt.s32.totalorder %s257, 7
        %s261 = scalar_select %p260, %s257, 7
        %s262 = smul.addr %s261, 4
        %s263 = smul.addr %s259, 32
        %s264 = sadd.s32 %s262, %s263
        %s265 = smul.addr %s264, 8
        %s266 = scalar_lea.vmem %s0, %s265
        %p267 = pneg %p53
        %p268 = pneg %p50
        %s269 = smul.u32 %s23, 8
        %s270 = ssub.s32 %s269, 1
        %p271 = scmp.gt.s32.totalorder %s270, 0
        %s272 = scalar_select %p271, %s270, 0
        %p273 = scmp.lt.s32.totalorder %s22, 1
        %s274 = scalar_select %p273, %s22, 1
        %p275 = scmp.lt.s32.totalorder %s272, 7
        %s276 = scalar_select %p275, %s272, 7
        %s277 = smul.addr %s276, 4
        %s278 = smul.addr %s274, 32
        %s279 = sadd.s32 %s277, %s278
        %s280 = smul.addr %s279, 8
        %s281 = scalar_lea.vmem %s1, %s280
        %p282 = pneg %p89
        %p283 = pneg %p86
        %s284 = sadd.s32 %s23, 1
        %s285 = smul.u32 %s284, 8
        %p286 = scmp.lt.s32.totalorder %s285, 7
        %s287 = scalar_select %p286, %s285, 7
        %p288 = scmp.lt.s32.totalorder %s22, 1
        %s289 = scalar_select %p288, %s22, 1
        %p290 = scmp.lt.s32.totalorder %s287, 7
        %s291 = scalar_select %p290, %s287, 7
        %s292 = smul.addr %s291, 4
        %s293 = smul.addr %s289, 32
        %s294 = sadd.s32 %s292, %s293
        %s295 = smul.addr %s294, 8
        %s296 = scalar_lea.vmem %s2, %s295
        %p297 = pneg %p125
        %p298 = pneg %p122
        %p299 = pneg %p146
        %p300 = pneg %p143
        %p301 = pneg %p174
        %p302 = pneg %p171
        %s303 = sand.u32 %s161, 1
        %s304 = scalar_lea.sflag [#allocation4], %s303
        %s305 = sand.u32 %s161, 1
        %s306 = smul.addr %s305, 64
        %s307 = scalar_lea.vmem [#allocation3], %s306
        %s308 = smul.u32 8, %s23
        %p309 = scmp.lt.s32.totalorder %s22, 1
        %s310 = scalar_select %p309, %s22, 1
        %p311 = scmp.lt.s32.totalorder %s308, 7
        %s312 = scalar_select %p311, %s308, 7
        %s313 = smul.addr %s312, 4
        %s314 = smul.addr %s310, 32
        %s315 = sadd.s32 %s313, %s314
        %s316 = smul.addr %s315, 8
        %s317 = scalar_lea.vmem %s0, %s316
        %s318 = smul.u32 8, %s23
        %s319 = smul.u32 %s23, 8
        %s320 = ssub.s32 %s319, 1
        %p321 = scmp.gt.s32.totalorder %s320, 0
        %s322 = scalar_select %p321, %s320, 0
        %p323 = scmp.lt.s32.totalorder %s22, 1
        %s324 = scalar_select %p323, %s22, 1
        %p325 = scmp.lt.s32.totalorder %s322, 7
        %s326 = scalar_select %p325, %s322, 7
        %s327 = smul.addr %s326, 4
        %s328 = smul.addr %s324, 32
        %s329 = sadd.s32 %s327, %s328
        %s330 = smul.addr %s329, 8
        %s331 = scalar_lea.vmem %s1, %s330
        %s332 = smul.u32 %s23, 8
        %s333 = ssub.s32 %s332, 1
        %p334 = scmp.gt.s32.totalorder %s333, 0
        %s335 = scalar_select %p334, %s333, 0
        %s336 = sadd.s32 %s23, 1
        %s337 = smul.u32 %s336, 8
        %p338 = scmp.lt.s32.totalorder %s337, 7
        %s339 = scalar_select %p338, %s337, 7
        %p340 = scmp.lt.s32.totalorder %s22, 1
        %s341 = scalar_select %p340, %s22, 1
        %p342 = scmp.lt.s32.totalorder %s339, 7
        %s343 = scalar_select %p342, %s339, 7
        %s344 = smul.addr %s343, 4
        %s345 = smul.addr %s341, 32
        %s346 = sadd.s32 %s344, %s345
        %s347 = smul.addr %s346, 8
        %s348 = scalar_lea.vmem %s2, %s347
        %s349 = sadd.s32 %s23, 1
        %s350 = smul.u32 %s349, 8
        %p351 = scmp.lt.s32.totalorder %s350, 7
        %s352 = scalar_select %p351, %s350, 7
        %s353 = smul.u32 8, %s23
        %v354 = vld [vmem:[%s317] sm:$0xff]
        %v355 = vld [vmem:[%s317 + $0x8] sm:$0xff]
        %v356 = vld [vmem:[%s317 + $0x10] sm:$0xff]
        %v357 = vld [vmem:[%s317 + $0x18] sm:$0xff]
        %v358 = vld [vmem:[%s317 + $0x20] sm:$0xff]
        %v359 = vld [vmem:[%s317 + $0x28] sm:$0xff]
        %v360 = vld [vmem:[%s317 + $0x30] sm:$0xff]
        %v361 = vld [vmem:[%s317 + $0x38] sm:$0xff]
        %v362 = vld [vmem:[%s317 + $0x40] sm:$0xff]
        %v363 = vld [vmem:[%s317 + $0x48] sm:$0xff]
        %v364 = vld [vmem:[%s317 + $0x50] sm:$0xff]
        %v365 = vld [vmem:[%s317 + $0x58] sm:$0xff]
        %v366 = vld [vmem:[%s317 + $0x60] sm:$0xff]
        %v367 = vld [vmem:[%s317 + $0x68] sm:$0xff]
        %v368 = vld [vmem:[%s317 + $0x70] sm:$0xff]
        %v369 = vld [vmem:[%s317 + $0x78] sm:$0xff]
        %v370 = vld [vmem:[%s317 + $0x80] sm:$0xff]
        %v371 = vld [vmem:[%s317 + $0x88] sm:$0xff]
        %v372 = vld [vmem:[%s317 + $0x90] sm:$0xff]
        %v373 = vld [vmem:[%s317 + $0x98] sm:$0xff]
        %v374 = vld [vmem:[%s317 + $0xa0] sm:$0xff]
        %v375 = vld [vmem:[%s317 + $0xa8] sm:$0xff]
        %v376 = vld [vmem:[%s317 + $0xb0] sm:$0xff]
        %v377 = vld [vmem:[%s317 + $0xb8] sm:$0xff]
        %v378 = vld [vmem:[%s317 + $0xc0] sm:$0xff]
        %v379 = vld [vmem:[%s317 + $0xc8] sm:$0xff]
        %v380 = vld [vmem:[%s317 + $0xd0] sm:$0xff]
        %v381 = vld [vmem:[%s317 + $0xd8] sm:$0xff]
        %v382 = vld [vmem:[%s317 + $0xe0] sm:$0xff]
        %v383 = vld [vmem:[%s317 + $0xe8] sm:$0xff]
        %v384 = vld [vmem:[%s317 + $0xf0] sm:$0xff]
        %v385 = vld [vmem:[%s317 + $0xf8] sm:$0xff]
        %v386 = vadd.f32 %v354, %v355
        %v387 = vadd.f32 %v358, %v359
        %v388 = vadd.f32 %v362, %v363
        %v389 = vadd.f32 %v366, %v367
        %v390 = vadd.f32 %v370, %v371
        %v391 = vadd.f32 %v374, %v375
        %v392 = vadd.f32 %v378, %v379
        %v393 = vadd.f32 %v382, %v383
        %v394 = vadd.f32 %v386, %v356
        %v395 = vadd.f32 %v387, %v360
        %v396 = vadd.f32 %v388, %v364
        %v397 = vadd.f32 %v389, %v368
        %v398 = vadd.f32 %v390, %v372
        %v399 = vadd.f32 %v391, %v376
        %v400 = vadd.f32 %v392, %v380
        %v401 = vadd.f32 %v393, %v384
        %v402 = vadd.f32 %v394, %v357
        %v403 = vadd.f32 %v395, %v361
        %v404 = vadd.f32 %v396, %v365
        %v405 = vadd.f32 %v397, %v369
        %v406 = vadd.f32 %v398, %v373
        %v407 = vadd.f32 %v399, %v377
        %v408 = vadd.f32 %v400, %v381
        %v409 = vadd.f32 %v401, %v385
        %v410 = vld [vmem:[%s331] sm:$0xff]
        %v411 = vld [vmem:[%s331 + $0x8] sm:$0xff]
        %v412 = vld [vmem:[%s331 + $0x10] sm:$0xff]
        %v413 = vld [vmem:[%s331 + $0x18] sm:$0xff]
        %v414 = vadd.f32 %v410, %v411
        %v415 = vadd.f32 %v414, %v412
        %v416 = vadd.f32 %v415, %v413
        %v417 = vld [vmem:[%s348] sm:$0xff]
        %v418 = vld [vmem:[%s348 + $0x8] sm:$0xff]
        %v419 = vld [vmem:[%s348 + $0x10] sm:$0xff]
        %v420 = vld [vmem:[%s348 + $0x18] sm:$0xff]
        %v421 = vadd.f32 %v417, %v418
        %v422 = vadd.f32 %v421, %v419
        %v423 = vadd.f32 %v422, %v420
        %p424 = scmp.gt.s32.totalorder %s23, 0
        %s425 = scalar_select %p424, 1, 0
        %v426 = vstv %s425
        %vm427 = vcmp.eq.s32.totalorder %v426, 1
        %v428 = vsel %vm427, %v416, 0.0
        %p429 = scmp.lt.s32.totalorder %s23, 0
        %s430 = scalar_select %p429, 1, 0
        %v431 = vstv %s430
        %vm432 = vcmp.eq.s32.totalorder %v431, 1
        %v433 = vsel %vm432, %v423, 0.0
        %vm434 = vcmask 31744
        %435 = vst.msk [vmem:[#allocation2] sm:$0xff] %vm434, 0.0
        %436 = vst.msk [vmem:[#allocation2 + $0x18] sm:$0xff] %vm434, 0.0
        %437 = vst.msk [vmem:[#allocation2 + $0x30] sm:$0xff] %vm434, 0.0
        %438 = vst.msk [vmem:[#allocation2 + $0x48] sm:$0xff] %vm434, 0.0
        %439 = vst.msk [vmem:[#allocation2 + $0x60] sm:$0xff] %vm434, 0.0
        %440 = vst.msk [vmem:[#allocation2 + $0x78] sm:$0xff] %vm434, 0.0
        %441 = vst.msk [vmem:[#allocation2 + $0x90] sm:$0xff] %vm434, 0.0
        %442 = vst.msk [vmem:[#allocation2 + $0xa8] sm:$0xff] %vm434, 0.0
        %443 = vst.msk [vmem:[#allocation2 + $0xc0] sm:$0xff] %vm434, 0.0
        %444 = vst.msk [vmem:[#allocation2 + $0xd8] sm:$0xff] %vm434, 0.0
        %445 = vst.msk [vmem:[#allocation2 + $0x10] sm:$0xff] %vm434, 0.0
        %446 = vst.msk [vmem:[#allocation2 + $0x28] sm:$0xff] %vm434, 0.0
        %447 = vst.msk [vmem:[#allocation2 + $0x40] sm:$0xff] %vm434, 0.0
        %448 = vst.msk [vmem:[#allocation2 + $0x58] sm:$0xff] %vm434, 0.0
        %449 = vst.msk [vmem:[#allocation2 + $0x70] sm:$0xff] %vm434, 0.0
        %450 = vst.msk [vmem:[#allocation2 + $0x88] sm:$0xff] %vm434, 0.0
        %451 = vst.msk [vmem:[#allocation2 + $0xa0] sm:$0xff] %vm434, 0.0
        %452 = vst.msk [vmem:[#allocation2 + $0xb8] sm:$0xff] %vm434, 0.0
        %453 = vst.msk [vmem:[#allocation2 + $0xd0] sm:$0xff] %vm434, 0.0
        %454 = vst.msk [vmem:[#allocation2 + $0xe8] sm:$0xff] %vm434, 0.0
        %455 = vst.msk [vmem:[#allocation2 + $0x8] sm:$0xff] %vm434, %v428
        %s456 = scalar_lea.vmem [#allocation2], 24
        %457 = vst.msk [vmem:[%s456 + $0x8] sm:$0xff] %vm434, %v402
        %458 = vst.msk [vmem:[%s456 + $0x20] sm:$0xff] %vm434, %v403
        %459 = vst.msk [vmem:[%s456 + $0x38] sm:$0xff] %vm434, %v404
        %460 = vst.msk [vmem:[%s456 + $0x50] sm:$0xff] %vm434, %v405
        %461 = vst.msk [vmem:[%s456 + $0x68] sm:$0xff] %vm434, %v406
        %462 = vst.msk [vmem:[%s456 + $0x80] sm:$0xff] %vm434, %v407
        %463 = vst.msk [vmem:[%s456 + $0x98] sm:$0xff] %vm434, %v408
        %464 = vst.msk [vmem:[%s456 + $0xb0] sm:$0xff] %vm434, %v409
        %s465 = scalar_lea.vmem [#allocation2], 216
        %466 = vst.msk [vmem:[%s465 + $0x8] sm:$0xff] %vm434, %v433
        %v467 = vld [vmem:[#allocation2 + $0x7] sm:$0xff]
        %v468 = vld [vmem:[#allocation2 + $0x1f] sm:$0xff]
        %v469 = vld [vmem:[#allocation2 + $0x37] sm:$0xff]
        %v470 = vld [vmem:[#allocation2 + $0x4f] sm:$0xff]
        %v471 = vld [vmem:[#allocation2 + $0x67] sm:$0xff]
        %v472 = vld [vmem:[#allocation2 + $0x7f] sm:$0xff]
        %v473 = vld [vmem:[#allocation2 + $0x97] sm:$0xff]
        %v474 = vld [vmem:[#allocation2 + $0xaf] sm:$0xff]
        %v475 = vld [vmem:[%s3] sm:$0xf]
        %v476 = vld [vmem:[#allocation2 + $0x8] sm:$0xff]
        %v477 = vld [vmem:[#allocation2 + $0x20] sm:$0xff]
        %v478 = vld [vmem:[#allocation2 + $0x38] sm:$0xff]
        %v479 = vld [vmem:[#allocation2 + $0x50] sm:$0xff]
        %v480 = vld [vmem:[#allocation2 + $0x68] sm:$0xff]
        %v481 = vld [vmem:[#allocation2 + $0x80] sm:$0xff]
        %v482 = vld [vmem:[#allocation2 + $0x98] sm:$0xff]
        %v483 = vld [vmem:[#allocation2 + $0xb0] sm:$0xff]
        %s484 = scalar_lea.vmem %s3, 4
        %v485 = vld [vmem:[%s484] sm:$0xf]
        %v487 = vsel %vm434, %v476, 0
        %v490 = vsel %vm434, %v477, 0
        %v493 = vsel %vm434, %v478, 0
        %v496 = vsel %vm434, %v479, 0
        %v499 = vsel %vm434, %v480, 0
        %v502 = vsel %vm434, %v481, 0
        %v505 = vsel %vm434, %v482, 0
        %v508 = vsel %vm434, %v483, 0
        %vm510 = vcmask 1043456
        %v512 = vsel %vm510, %v485, 0
        %514 = vmatprep.subr.mxu0 0.0
        %515 = vmatpush1.msra.mxu0 0.0
        %516 = vmatprep.subr.mxu0 0.0
        %517 = vmatpush1.msra.mxu0 0.0
        %518 = vmatprep.subr.mxu0 0.0
        %519 = vmatpush1.msra.mxu0 0.0
        %520 = vmatprep.subr.mxu0 0.0
        %521 = vmatpush1.msra.mxu0 0.0
        %522 = vmatprep.subr.mxu0 0.0
        %523 = vmatpush1.msra.mxu0 0.0
        %524 = vmatprep.subr.mxu0 0.0
        %525 = vmatpush1.msra.mxu0 0.0
        %526 = vmatprep.subr.mxu0 0.0
        %527 = vmatpush1.msra.mxu0 0.0
        %528 = vmatprep.subr.mxu0 0.0
        %529 = vmatpush1.msra.mxu0 0.0
        %530 = vmatprep.subr.mxu0 0.0
        %531 = vmatpush1.msra.mxu0 0.0
        %532 = vmatprep.subr.mxu0 0.0
        %533 = vmatpush1.msra.mxu0 0.0
        %534 = vmatprep.subr.mxu0 0.0
        %535 = vmatpush1.msra.mxu0 0.0
        %536 = vmatprep.subr.mxu0 0.0
        %537 = vmatpush1.msra.mxu0 0.0
        %538 = vmatprep.subr.mxu0 0.0
        %539 = vmatpush1.msra.mxu0 0.0
        %540 = vmatprep.subr.mxu0 0.0
        %541 = vmatpush1.msra.mxu0 0.0
        %542 = vmatprep.subr.mxu0 0.0
        %543 = vmatpush1.msra.mxu0 0.0
        %544 = vmatprep.subr.mxu0 0.0
        %545 = vmatpush1.msra.mxu0 %v512
        %546 = vmatprep.subr.mxu0 0.0
        %547 = vmatpush2.msra.mxu0 0.0
        %548 = vmatprep.subr.mxu0 0.0
        %549 = vmatpush2.msra.mxu0 0.0
        %550 = vmatprep.subr.mxu0 0.0
        %551 = vmatpush2.msra.mxu0 0.0
        %552 = vmatprep.subr.mxu0 0.0
        %553 = vmatpush2.msra.mxu0 0.0
        %554 = vmatprep.subr.mxu0 0.0
        %555 = vmatpush2.msra.mxu0 0.0
        %556 = vmatprep.subr.mxu0 0.0
        %557 = vmatpush2.msra.mxu0 0.0
        %558 = vmatprep.subr.mxu0 0.0
        %559 = vmatpush2.msra.mxu0 0.0
        %560 = vmatprep.subr.mxu0 0.0
        %561 = vmatpush2.msra.mxu0 0.0
        %562 = vmatprep.subr.mxu0 0.0
        %563 = vmatpush2.msra.mxu0 0.0
        %564 = vmatprep.subr.mxu0 0.0
        %565 = vmatpush2.msra.mxu0 0.0
        %566 = vmatprep.subr.mxu0 0.0
        %567 = vmatpush2.msra.mxu0 0.0
        %568 = vmatprep.subr.mxu0 0.0
        %569 = vmatpush2.msra.mxu0 0.0
        %570 = vmatprep.subr.mxu0 0.0
        %571 = vmatpush2.msra.mxu0 0.0
        %572 = vmatprep.subr.mxu0 0.0
        %573 = vmatpush2.msra.mxu0 0.0
        %574 = vmatprep.subr.mxu0 0.0
        %575 = vmatpush2.msra.mxu0 0.0
        %576 = vmatprep.subr.mxu0 0.0
        %577 = vmatpush2.msra.mxu0 0.0
        %578 = vmatprep.mubr.f32.mxu0 0.0
        %579 = vmatmul.mubr.f32.gmra.mxu0 %v487
        %v580 = vpop.f32.mrf.mxu0
        %v581 = vadd.f32 0.0, %v580
        %v582 = vpop.f32.mrf.mxu0
        %583 = vmatprep.mubr.f32.mxu0 0.0
        %584 = vmatmul.mubr.f32.gmra.mxu0 %v490
        %v585 = vpop.f32.mrf.mxu0
        %v586 = vadd.f32 0.0, %v585
        %v587 = vpop.f32.mrf.mxu0
        %588 = vmatprep.mubr.f32.mxu0 0.0
        %589 = vmatmul.mubr.f32.gmra.mxu0 %v493
        %v590 = vpop.f32.mrf.mxu0
        %v591 = vadd.f32 0.0, %v590
        %v592 = vpop.f32.mrf.mxu0
        %593 = vmatprep.mubr.f32.mxu0 0.0
        %594 = vmatmul.mubr.f32.gmra.mxu0 %v496
        %v595 = vpop.f32.mrf.mxu0
        %v596 = vadd.f32 0.0, %v595
        %v597 = vpop.f32.mrf.mxu0
        %598 = vmatprep.mubr.f32.mxu0 0.0
        %599 = vmatmul.mubr.f32.gmra.mxu0 %v499
        %v600 = vpop.f32.mrf.mxu0
        %v601 = vadd.f32 0.0, %v600
        %v602 = vpop.f32.mrf.mxu0
        %603 = vmatprep.mubr.f32.mxu0 0.0
        %604 = vmatmul.mubr.f32.gmra.mxu0 %v502
        %v605 = vpop.f32.mrf.mxu0
        %v606 = vadd.f32 0.0, %v605
        %v607 = vpop.f32.mrf.mxu0
        %608 = vmatprep.mubr.f32.mxu0 0.0
        %609 = vmatmul.mubr.f32.gmra.mxu0 %v505
        %v610 = vpop.f32.mrf.mxu0
        %v611 = vadd.f32 0.0, %v610
        %v612 = vpop.f32.mrf.mxu0
        %613 = vmatprep.mubr.f32.mxu0 0.0
        %614 = vmatmul.mubr.f32.gmra.mxu0 %v508
        %v615 = vpop.f32.mrf.mxu0
        %v616 = vadd.f32 0.0, %v615
        %v617 = vpop.f32.mrf.mxu0
        %618 = vdwg.mxu0
        %v620 = vsel %vm434, %v467, 0
        %v623 = vsel %vm434, %v468, 0
        %v626 = vsel %vm434, %v469, 0
        %v629 = vsel %vm434, %v470, 0
        %v632 = vsel %vm434, %v471, 0
        %v635 = vsel %vm434, %v472, 0
        %v638 = vsel %vm434, %v473, 0
        %v641 = vsel %vm434, %v474, 0
        %v644 = vsel %vm510, %v475, 0
        %646 = vmatprep.subr.mxu0 0.0
        %647 = vmatpush1.msra.mxu0 0.0
        %648 = vmatprep.subr.mxu0 0.0
        %649 = vmatpush1.msra.mxu0 0.0
        %650 = vmatprep.subr.mxu0 0.0
        %651 = vmatpush1.msra.mxu0 0.0
        %652 = vmatprep.subr.mxu0 0.0
        %653 = vmatpush1.msra.mxu0 0.0
        %654 = vmatprep.subr.mxu0 0.0
        %655 = vmatpush1.msra.mxu0 0.0
        %656 = vmatprep.subr.mxu0 0.0
        %657 = vmatpush1.msra.mxu0 0.0
        %658 = vmatprep.subr.mxu0 0.0
        %659 = vmatpush1.msra.mxu0 0.0
        %660 = vmatprep.subr.mxu0 0.0
        %661 = vmatpush1.msra.mxu0 0.0
        %662 = vmatprep.subr.mxu0 0.0
        %663 = vmatpush1.msra.mxu0 0.0
        %664 = vmatprep.subr.mxu0 0.0
        %665 = vmatpush1.msra.mxu0 0.0
        %666 = vmatprep.subr.mxu0 0.0
        %667 = vmatpush1.msra.mxu0 0.0
        %668 = vmatprep.subr.mxu0 0.0
        %669 = vmatpush1.msra.mxu0 0.0
        %670 = vmatprep.subr.mxu0 0.0
        %671 = vmatpush1.msra.mxu0 0.0
        %672 = vmatprep.subr.mxu0 0.0
        %673 = vmatpush1.msra.mxu0 0.0
        %674 = vmatprep.subr.mxu0 0.0
        %675 = vmatpush1.msra.mxu0 0.0
        %676 = vmatprep.subr.mxu0 0.0
        %677 = vmatpush1.msra.mxu0 %v644
        %678 = vmatprep.subr.mxu0 0.0
        %679 = vmatpush2.msra.mxu0 0.0
        %680 = vmatprep.subr.mxu0 0.0
        %681 = vmatpush2.msra.mxu0 0.0
        %682 = vmatprep.subr.mxu0 0.0
        %683 = vmatpush2.msra.mxu0 0.0
        %684 = vmatprep.subr.mxu0 0.0
        %685 = vmatpush2.msra.mxu0 0.0
        %686 = vmatprep.subr.mxu0 0.0
        %687 = vmatpush2.msra.mxu0 0.0
        %688 = vmatprep.subr.mxu0 0.0
        %689 = vmatpush2.msra.mxu0 0.0
        %690 = vmatprep.subr.mxu0 0.0
        %691 = vmatpush2.msra.mxu0 0.0
        %692 = vmatprep.subr.mxu0 0.0
        %693 = vmatpush2.msra.mxu0 0.0
        %694 = vmatprep.subr.mxu0 0.0
        %695 = vmatpush2.msra.mxu0 0.0
        %696 = vmatprep.subr.mxu0 0.0
        %697 = vmatpush2.msra.mxu0 0.0
        %698 = vmatprep.subr.mxu0 0.0
        %699 = vmatpush2.msra.mxu0 0.0
        %700 = vmatprep.subr.mxu0 0.0
        %701 = vmatpush2.msra.mxu0 0.0
        %702 = vmatprep.subr.mxu0 0.0
        %703 = vmatpush2.msra.mxu0 0.0
        %704 = vmatprep.subr.mxu0 0.0
        %705 = vmatpush2.msra.mxu0 0.0
        %706 = vmatprep.subr.mxu0 0.0
        %707 = vmatpush2.msra.mxu0 0.0
        %708 = vmatprep.subr.mxu0 0.0
        %709 = vmatpush2.msra.mxu0 0.0
        %710 = vmatprep.mubr.f32.mxu0 0.0
        %711 = vmatmul.mubr.f32.gmra.mxu0 %v620
        %v712 = vpop.f32.mrf.mxu0
        %v713 = vadd.f32 %v581, %v712
        %v714 = vpop.f32.mrf.mxu0
        %715 = vmatprep.mubr.f32.mxu0 0.0
        %716 = vmatmul.mubr.f32.gmra.mxu0 %v623
        %v717 = vpop.f32.mrf.mxu0
        %v718 = vadd.f32 %v586, %v717
        %v719 = vpop.f32.mrf.mxu0
        %720 = vmatprep.mubr.f32.mxu0 0.0
        %721 = vmatmul.mubr.f32.gmra.mxu0 %v626
        %v722 = vpop.f32.mrf.mxu0
        %v723 = vadd.f32 %v591, %v722
        %v724 = vpop.f32.mrf.mxu0
        %725 = vmatprep.mubr.f32.mxu0 0.0
        %726 = vmatmul.mubr.f32.gmra.mxu0 %v629
        %v727 = vpop.f32.mrf.mxu0
        %v728 = vadd.f32 %v596, %v727
        %v729 = vpop.f32.mrf.mxu0
        %730 = vmatprep.mubr.f32.mxu0 0.0
        %731 = vmatmul.mubr.f32.gmra.mxu0 %v632
        %v732 = vpop.f32.mrf.mxu0
        %v733 = vadd.f32 %v601, %v732
        %v734 = vpop.f32.mrf.mxu0
        %735 = vmatprep.mubr.f32.mxu0 0.0
        %736 = vmatmul.mubr.f32.gmra.mxu0 %v635
        %v737 = vpop.f32.mrf.mxu0
        %v738 = vadd.f32 %v606, %v737
        %v739 = vpop.f32.mrf.mxu0
        %740 = vmatprep.mubr.f32.mxu0 0.0
        %741 = vmatmul.mubr.f32.gmra.mxu0 %v638
        %v742 = vpop.f32.mrf.mxu0
        %v743 = vadd.f32 %v611, %v742
        %v744 = vpop.f32.mrf.mxu0
        %745 = vmatprep.mubr.f32.mxu0 0.0
        %746 = vmatmul.mubr.f32.gmra.mxu0 %v641
        %v747 = vpop.f32.mrf.mxu0
        %v748 = vadd.f32 %v616, %v747
        %v749 = vpop.f32.mrf.mxu0
        %750 = vdwg.mxu0
        %v751 = vld [vmem:[#allocation2 + $0x9] sm:$0xff]
        %v752 = vld [vmem:[#allocation2 + $0x21] sm:$0xff]
        %v753 = vld [vmem:[#allocation2 + $0x39] sm:$0xff]
        %v754 = vld [vmem:[#allocation2 + $0x51] sm:$0xff]
        %v755 = vld [vmem:[#allocation2 + $0x69] sm:$0xff]
        %v756 = vld [vmem:[#allocation2 + $0x81] sm:$0xff]
        %v757 = vld [vmem:[#allocation2 + $0x99] sm:$0xff]
        %v758 = vld [vmem:[#allocation2 + $0xb1] sm:$0xff]
        %s759 = scalar_lea.vmem %s3, 8
        %v760 = vld [vmem:[%s759] sm:$0xf]
        %v762 = vsel %vm434, %v751, 0
        %v765 = vsel %vm434, %v752, 0
        %v768 = vsel %vm434, %v753, 0
        %v771 = vsel %vm434, %v754, 0
        %v774 = vsel %vm434, %v755, 0
        %v777 = vsel %vm434, %v756, 0
        %v780 = vsel %vm434, %v757, 0
        %v783 = vsel %vm434, %v758, 0
        %v786 = vsel %vm510, %v760, 0
        %788 = vmatprep.subr.mxu0 0.0
        %789 = vmatpush1.msra.mxu0 0.0
        %790 = vmatprep.subr.mxu0 0.0
        %791 = vmatpush1.msra.mxu0 0.0
        %792 = vmatprep.subr.mxu0 0.0
        %793 = vmatpush1.msra.mxu0 0.0
        %794 = vmatprep.subr.mxu0 0.0
        %795 = vmatpush1.msra.mxu0 0.0
        %796 = vmatprep.subr.mxu0 0.0
        %797 = vmatpush1.msra.mxu0 0.0
        %798 = vmatprep.subr.mxu0 0.0
        %799 = vmatpush1.msra.mxu0 0.0
        %800 = vmatprep.subr.mxu0 0.0
        %801 = vmatpush1.msra.mxu0 0.0
        %802 = vmatprep.subr.mxu0 0.0
        %803 = vmatpush1.msra.mxu0 0.0
        %804 = vmatprep.subr.mxu0 0.0
        %805 = vmatpush1.msra.mxu0 0.0
        %806 = vmatprep.subr.mxu0 0.0
        %807 = vmatpush1.msra.mxu0 0.0
        %808 = vmatprep.subr.mxu0 0.0
        %809 = vmatpush1.msra.mxu0 0.0
        %810 = vmatprep.subr.mxu0 0.0
        %811 = vmatpush1.msra.mxu0 0.0
        %812 = vmatprep.subr.mxu0 0.0
        %813 = vmatpush1.msra.mxu0 0.0
        %814 = vmatprep.subr.mxu0 0.0
        %815 = vmatpush1.msra.mxu0 0.0
        %816 = vmatprep.subr.mxu0 0.0
        %817 = vmatpush1.msra.mxu0 0.0
        %818 = vmatprep.subr.mxu0 0.0
        %819 = vmatpush1.msra.mxu0 %v786
        %820 = vmatprep.subr.mxu0 0.0
        %821 = vmatpush2.msra.mxu0 0.0
        %822 = vmatprep.subr.mxu0 0.0
        %823 = vmatpush2.msra.mxu0 0.0
        %824 = vmatprep.subr.mxu0 0.0
        %825 = vmatpush2.msra.mxu0 0.0
        %826 = vmatprep.subr.mxu0 0.0
        %827 = vmatpush2.msra.mxu0 0.0
        %828 = vmatprep.subr.mxu0 0.0
        %829 = vmatpush2.msra.mxu0 0.0
        %830 = vmatprep.subr.mxu0 0.0
        %831 = vmatpush2.msra.mxu0 0.0
        %832 = vmatprep.subr.mxu0 0.0
        %833 = vmatpush2.msra.mxu0 0.0
        %834 = vmatprep.subr.mxu0 0.0
        %835 = vmatpush2.msra.mxu0 0.0
        %836 = vmatprep.subr.mxu0 0.0
        %837 = vmatpush2.msra.mxu0 0.0
        %838 = vmatprep.subr.mxu0 0.0
        %839 = vmatpush2.msra.mxu0 0.0
        %840 = vmatprep.subr.mxu0 0.0
        %841 = vmatpush2.msra.mxu0 0.0
        %842 = vmatprep.subr.mxu0 0.0
        %843 = vmatpush2.msra.mxu0 0.0
        %844 = vmatprep.subr.mxu0 0.0
        %845 = vmatpush2.msra.mxu0 0.0
        %846 = vmatprep.subr.mxu0 0.0
        %847 = vmatpush2.msra.mxu0 0.0
        %848 = vmatprep.subr.mxu0 0.0
        %849 = vmatpush2.msra.mxu0 0.0
        %850 = vmatprep.subr.mxu0 0.0
        %851 = vmatpush2.msra.mxu0 0.0
        %852 = vmatprep.mubr.f32.mxu0 0.0
        %853 = vmatmul.mubr.f32.gmra.mxu0 %v762
        %v854 = vpop.f32.mrf.mxu0
        %v855 = vadd.f32 0.0, %v854
        %v856 = vpop.f32.mrf.mxu0
        %857 = vmatprep.mubr.f32.mxu0 0.0
        %858 = vmatmul.mubr.f32.gmra.mxu0 %v765
        %v859 = vpop.f32.mrf.mxu0
        %v860 = vadd.f32 0.0, %v859
        %v861 = vpop.f32.mrf.mxu0
        %862 = vmatprep.mubr.f32.mxu0 0.0
        %863 = vmatmul.mubr.f32.gmra.mxu0 %v768
        %v864 = vpop.f32.mrf.mxu0
        %v865 = vadd.f32 0.0, %v864
        %v866 = vpop.f32.mrf.mxu0
        %867 = vmatprep.mubr.f32.mxu0 0.0
        %868 = vmatmul.mubr.f32.gmra.mxu0 %v771
        %v869 = vpop.f32.mrf.mxu0
        %v870 = vadd.f32 0.0, %v869
        %v871 = vpop.f32.mrf.mxu0
        %872 = vmatprep.mubr.f32.mxu0 0.0
        %873 = vmatmul.mubr.f32.gmra.mxu0 %v774
        %v874 = vpop.f32.mrf.mxu0
        %v875 = vadd.f32 0.0, %v874
        %v876 = vpop.f32.mrf.mxu0
        %877 = vmatprep.mubr.f32.mxu0 0.0
        %878 = vmatmul.mubr.f32.gmra.mxu0 %v777
        %v879 = vpop.f32.mrf.mxu0
        %v880 = vadd.f32 0.0, %v879
        %v881 = vpop.f32.mrf.mxu0
        %882 = vmatprep.mubr.f32.mxu0 0.0
        %883 = vmatmul.mubr.f32.gmra.mxu0 %v780
        %v884 = vpop.f32.mrf.mxu0
        %v885 = vadd.f32 0.0, %v884
        %v886 = vpop.f32.mrf.mxu0
        %887 = vmatprep.mubr.f32.mxu0 0.0
        %888 = vmatmul.mubr.f32.gmra.mxu0 %v783
        %v889 = vpop.f32.mrf.mxu0
        %v890 = vadd.f32 0.0, %v889
        %v891 = vpop.f32.mrf.mxu0
        %892 = vdwg.mxu0
        %v893 = vadd.f32 %v713, %v855
        %v894 = vadd.f32 %v718, %v860
        %v895 = vadd.f32 %v723, %v865
        %v896 = vadd.f32 %v728, %v870
        %v897 = vadd.f32 %v733, %v875
        %v898 = vadd.f32 %v738, %v880
        %v899 = vadd.f32 %v743, %v885
        %v900 = vadd.f32 %v748, %v890
        %v901 = vld [vmem:[%s456 + $0x7] sm:$0xff]
        %v902 = vld [vmem:[%s456 + $0x1f] sm:$0xff]
        %v903 = vld [vmem:[%s456 + $0x37] sm:$0xff]
        %v904 = vld [vmem:[%s456 + $0x4f] sm:$0xff]
        %v905 = vld [vmem:[%s456 + $0x67] sm:$0xff]
        %v906 = vld [vmem:[%s456 + $0x7f] sm:$0xff]
        %v907 = vld [vmem:[%s456 + $0x97] sm:$0xff]
        %v908 = vld [vmem:[%s456 + $0xaf] sm:$0xff]
        %s909 = scalar_lea.vmem %s3, 12
        %v910 = vld [vmem:[%s909] sm:$0xf]
        %v912 = vsel %vm434, %v901, 0
        %v915 = vsel %vm434, %v902, 0
        %v918 = vsel %vm434, %v903, 0
        %v921 = vsel %vm434, %v904, 0
        %v924 = vsel %vm434, %v905, 0
        %v927 = vsel %vm434, %v906, 0
        %v930 = vsel %vm434, %v907, 0
        %v933 = vsel %vm434, %v908, 0
        %v936 = vsel %vm510, %v910, 0
        %938 = vmatprep.subr.mxu0 0.0
        %939 = vmatpush1.msra.mxu0 0.0
        %940 = vmatprep.subr.mxu0 0.0
        %941 = vmatpush1.msra.mxu0 0.0
        %942 = vmatprep.subr.mxu0 0.0
        %943 = vmatpush1.msra.mxu0 0.0
        %944 = vmatprep.subr.mxu0 0.0
        %945 = vmatpush1.msra.mxu0 0.0
        %946 = vmatprep.subr.mxu0 0.0
        %947 = vmatpush1.msra.mxu0 0.0
        %948 = vmatprep.subr.mxu0 0.0
        %949 = vmatpush1.msra.mxu0 0.0
        %950 = vmatprep.subr.mxu0 0.0
        %951 = vmatpush1.msra.mxu0 0.0
        %952 = vmatprep.subr.mxu0 0.0
        %953 = vmatpush1.msra.mxu0 0.0
        %954 = vmatprep.subr.mxu0 0.0
        %955 = vmatpush1.msra.mxu0 0.0
        %956 = vmatprep.subr.mxu0 0.0
        %957 = vmatpush1.msra.mxu0 0.0
        %958 = vmatprep.subr.mxu0 0.0
        %959 = vmatpush1.msra.mxu0 0.0
        %960 = vmatprep.subr.mxu0 0.0
        %961 = vmatpush1.msra.mxu0 0.0
        %962 = vmatprep.subr.mxu0 0.0
        %963 = vmatpush1.msra.mxu0 0.0
        %964 = vmatprep.subr.mxu0 0.0
        %965 = vmatpush1.msra.mxu0 0.0
        %966 = vmatprep.subr.mxu0 0.0
        %967 = vmatpush1.msra.mxu0 0.0
        %968 = vmatprep.subr.mxu0 0.0
        %969 = vmatpush1.msra.mxu0 %v936
        %970 = vmatprep.subr.mxu0 0.0
        %971 = vmatpush2.msra.mxu0 0.0
        %972 = vmatprep.subr.mxu0 0.0
        %973 = vmatpush2.msra.mxu0 0.0
        %974 = vmatprep.subr.mxu0 0.0
        %975 = vmatpush2.msra.mxu0 0.0
        %976 = vmatprep.subr.mxu0 0.0
        %977 = vmatpush2.msra.mxu0 0.0
        %978 = vmatprep.subr.mxu0 0.0
        %979 = vmatpush2.msra.mxu0 0.0
        %980 = vmatprep.subr.mxu0 0.0
        %981 = vmatpush2.msra.mxu0 0.0
        %982 = vmatprep.subr.mxu0 0.0
        %983 = vmatpush2.msra.mxu0 0.0
        %984 = vmatprep.subr.mxu0 0.0
        %985 = vmatpush2.msra.mxu0 0.0
        %986 = vmatprep.subr.mxu0 0.0
        %987 = vmatpush2.msra.mxu0 0.0
        %988 = vmatprep.subr.mxu0 0.0
        %989 = vmatpush2.msra.mxu0 0.0
        %990 = vmatprep.subr.mxu0 0.0
        %991 = vmatpush2.msra.mxu0 0.0
        %992 = vmatprep.subr.mxu0 0.0
        %993 = vmatpush2.msra.mxu0 0.0
        %994 = vmatprep.subr.mxu0 0.0
        %995 = vmatpush2.msra.mxu0 0.0
        %996 = vmatprep.subr.mxu0 0.0
        %997 = vmatpush2.msra.mxu0 0.0
        %998 = vmatprep.subr.mxu0 0.0
        %999 = vmatpush2.msra.mxu0 0.0
        %1000 = vmatprep.subr.mxu0 0.0
        %1001 = vmatpush2.msra.mxu0 0.0
        %1002 = vmatprep.mubr.f32.mxu0 0.0
        %1003 = vmatmul.mubr.f32.gmra.mxu0 %v912
        %v1004 = vpop.f32.mrf.mxu0
        %v1005 = vadd.f32 0.0, %v1004
        %v1006 = vpop.f32.mrf.mxu0
        %1007 = vmatprep.mubr.f32.mxu0 0.0
        %1008 = vmatmul.mubr.f32.gmra.mxu0 %v915
        %v1009 = vpop.f32.mrf.mxu0
        %v1010 = vadd.f32 0.0, %v1009
        %v1011 = vpop.f32.mrf.mxu0
        %1012 = vmatprep.mubr.f32.mxu0 0.0
        %1013 = vmatmul.mubr.f32.gmra.mxu0 %v918
        %v1014 = vpop.f32.mrf.mxu0
        %v1015 = vadd.f32 0.0, %v1014
        %v1016 = vpop.f32.mrf.mxu0
        %1017 = vmatprep.mubr.f32.mxu0 0.0
        %1018 = vmatmul.mubr.f32.gmra.mxu0 %v921
        %v1019 = vpop.f32.mrf.mxu0
        %v1020 = vadd.f32 0.0, %v1019
        %v1021 = vpop.f32.mrf.mxu0
        %1022 = vmatprep.mubr.f32.mxu0 0.0
        %1023 = vmatmul.mubr.f32.gmra.mxu0 %v924
        %v1024 = vpop.f32.mrf.mxu0
        %v1025 = vadd.f32 0.0, %v1024
        %v1026 = vpop.f32.mrf.mxu0
        %1027 = vmatprep.mubr.f32.mxu0 0.0
        %1028 = vmatmul.mubr.f32.gmra.mxu0 %v927
        %v1029 = vpop.f32.mrf.mxu0
        %v1030 = vadd.f32 0.0, %v1029
        %v1031 = vpop.f32.mrf.mxu0
        %1032 = vmatprep.mubr.f32.mxu0 0.0
        %1033 = vmatmul.mubr.f32.gmra.mxu0 %v930
        %v1034 = vpop.f32.mrf.mxu0
        %v1035 = vadd.f32 0.0, %v1034
        %v1036 = vpop.f32.mrf.mxu0
        %1037 = vmatprep.mubr.f32.mxu0 0.0
        %1038 = vmatmul.mubr.f32.gmra.mxu0 %v933
        %v1039 = vpop.f32.mrf.mxu0
        %v1040 = vadd.f32 0.0, %v1039
        %v1041 = vpop.f32.mrf.mxu0
        %1042 = vdwg.mxu0
        %v1043 = vadd.f32 %v893, %v1005
        %v1044 = vadd.f32 %v894, %v1010
        %v1045 = vadd.f32 %v895, %v1015
        %v1046 = vadd.f32 %v896, %v1020
        %v1047 = vadd.f32 %v897, %v1025
        %v1048 = vadd.f32 %v898, %v1030
        %v1049 = vadd.f32 %v899, %v1035
        %v1050 = vadd.f32 %v900, %v1040
        %v1051 = vld [vmem:[%s456 + $0x8] sm:$0xff]
        %v1052 = vld [vmem:[%s456 + $0x20] sm:$0xff]
        %v1053 = vld [vmem:[%s456 + $0x38] sm:$0xff]
        %v1054 = vld [vmem:[%s456 + $0x50] sm:$0xff]
        %v1055 = vld [vmem:[%s456 + $0x68] sm:$0xff]
        %v1056 = vld [vmem:[%s456 + $0x80] sm:$0xff]
        %v1057 = vld [vmem:[%s456 + $0x98] sm:$0xff]
        %v1058 = vld [vmem:[%s456 + $0xb0] sm:$0xff]
        %s1059 = scalar_lea.vmem %s3, 16
        %v1060 = vld [vmem:[%s1059] sm:$0xf]
        %v1062 = vsel %vm434, %v1051, 0
        %v1065 = vsel %vm434, %v1052, 0
        %v1068 = vsel %vm434, %v1053, 0
        %v1071 = vsel %vm434, %v1054, 0
        %v1074 = vsel %vm434, %v1055, 0
        %v1077 = vsel %vm434, %v1056, 0
        %v1080 = vsel %vm434, %v1057, 0
        %v1083 = vsel %vm434, %v1058, 0
        %v1086 = vsel %vm510, %v1060, 0
        %1088 = vmatprep.subr.mxu0 0.0
        %1089 = vmatpush1.msra.mxu0 0.0
        %1090 = vmatprep.subr.mxu0 0.0
        %1091 = vmatpush1.msra.mxu0 0.0
        %1092 = vmatprep.subr.mxu0 0.0
        %1093 = vmatpush1.msra.mxu0 0.0
        %1094 = vmatprep.subr.mxu0 0.0
        %1095 = vmatpush1.msra.mxu0 0.0
        %1096 = vmatprep.subr.mxu0 0.0
        %1097 = vmatpush1.msra.mxu0 0.0
        %1098 = vmatprep.subr.mxu0 0.0
        %1099 = vmatpush1.msra.mxu0 0.0
        %1100 = vmatprep.subr.mxu0 0.0
        %1101 = vmatpush1.msra.mxu0 0.0
        %1102 = vmatprep.subr.mxu0 0.0
        %1103 = vmatpush1.msra.mxu0 0.0
        %1104 = vmatprep.subr.mxu0 0.0
        %1105 = vmatpush1.msra.mxu0 0.0
        %1106 = vmatprep.subr.mxu0 0.0
        %1107 = vmatpush1.msra.mxu0 0.0
        %1108 = vmatprep.subr.mxu0 0.0
        %1109 = vmatpush1.msra.mxu0 0.0
        %1110 = vmatprep.subr.mxu0 0.0
        %1111 = vmatpush1.msra.mxu0 0.0
        %1112 = vmatprep.subr.mxu0 0.0
        %1113 = vmatpush1.msra.mxu0 0.0
        %1114 = vmatprep.subr.mxu0 0.0
        %1115 = vmatpush1.msra.mxu0 0.0
        %1116 = vmatprep.subr.mxu0 0.0
        %1117 = vmatpush1.msra.mxu0 0.0
        %1118 = vmatprep.subr.mxu0 0.0
        %1119 = vmatpush1.msra.mxu0 %v1086
        %1120 = vmatprep.subr.mxu0 0.0
        %1121 = vmatpush2.msra.mxu0 0.0
        %1122 = vmatprep.subr.mxu0 0.0
        %1123 = vmatpush2.msra.mxu0 0.0
        %1124 = vmatprep.subr.mxu0 0.0
        %1125 = vmatpush2.msra.mxu0 0.0
        %1126 = vmatprep.subr.mxu0 0.0
        %1127 = vmatpush2.msra.mxu0 0.0
        %1128 = vmatprep.subr.mxu0 0.0
        %1129 = vmatpush2.msra.mxu0 0.0
        %1130 = vmatprep.subr.mxu0 0.0
        %1131 = vmatpush2.msra.mxu0 0.0
        %1132 = vmatprep.subr.mxu0 0.0
        %1133 = vmatpush2.msra.mxu0 0.0
        %1134 = vmatprep.subr.mxu0 0.0
        %1135 = vmatpush2.msra.mxu0 0.0
        %1136 = vmatprep.subr.mxu0 0.0
        %1137 = vmatpush2.msra.mxu0 0.0
        %1138 = vmatprep.subr.mxu0 0.0
        %1139 = vmatpush2.msra.mxu0 0.0
        %1140 = vmatprep.subr.mxu0 0.0
        %1141 = vmatpush2.msra.mxu0 0.0
        %1142 = vmatprep.subr.mxu0 0.0
        %1143 = vmatpush2.msra.mxu0 0.0
        %1144 = vmatprep.subr.mxu0 0.0
        %1145 = vmatpush2.msra.mxu0 0.0
        %1146 = vmatprep.subr.mxu0 0.0
        %1147 = vmatpush2.msra.mxu0 0.0
        %1148 = vmatprep.subr.mxu0 0.0
        %1149 = vmatpush2.msra.mxu0 0.0
        %1150 = vmatprep.subr.mxu0 0.0
        %1151 = vmatpush2.msra.mxu0 0.0
        %1152 = vmatprep.mubr.f32.mxu0 0.0
        %1153 = vmatmul.mubr.f32.gmra.mxu0 %v1062
        %v1154 = vpop.f32.mrf.mxu0
        %v1155 = vadd.f32 0.0, %v1154
        %v1156 = vpop.f32.mrf.mxu0
        %1157 = vmatprep.mubr.f32.mxu0 0.0
        %1158 = vmatmul.mubr.f32.gmra.mxu0 %v1065
        %v1159 = vpop.f32.mrf.mxu0
        %v1160 = vadd.f32 0.0, %v1159
        %v1161 = vpop.f32.mrf.mxu0
        %1162 = vmatprep.mubr.f32.mxu0 0.0
        %1163 = vmatmul.mubr.f32.gmra.mxu0 %v1068
        %v1164 = vpop.f32.mrf.mxu0
        %v1165 = vadd.f32 0.0, %v1164
        %v1166 = vpop.f32.mrf.mxu0
        %1167 = vmatprep.mubr.f32.mxu0 0.0
        %1168 = vmatmul.mubr.f32.gmra.mxu0 %v1071
        %v1169 = vpop.f32.mrf.mxu0
        %v1170 = vadd.f32 0.0, %v1169
        %v1171 = vpop.f32.mrf.mxu0
        %1172 = vmatprep.mubr.f32.mxu0 0.0
        %1173 = vmatmul.mubr.f32.gmra.mxu0 %v1074
        %v1174 = vpop.f32.mrf.mxu0
        %v1175 = vadd.f32 0.0, %v1174
        %v1176 = vpop.f32.mrf.mxu0
        %1177 = vmatprep.mubr.f32.mxu0 0.0
        %1178 = vmatmul.mubr.f32.gmra.mxu0 %v1077
        %v1179 = vpop.f32.mrf.mxu0
        %v1180 = vadd.f32 0.0, %v1179
        %v1181 = vpop.f32.mrf.mxu0
        %1182 = vmatprep.mubr.f32.mxu0 0.0
        %1183 = vmatmul.mubr.f32.gmra.mxu0 %v1080
        %v1184 = vpop.f32.mrf.mxu0
        %v1185 = vadd.f32 0.0, %v1184
        %v1186 = vpop.f32.mrf.mxu0
        %1187 = vmatprep.mubr.f32.mxu0 0.0
        %1188 = vmatmul.mubr.f32.gmra.mxu0 %v1083
        %v1189 = vpop.f32.mrf.mxu0
        %v1190 = vadd.f32 0.0, %v1189
        %v1191 = vpop.f32.mrf.mxu0
        %1192 = vdwg.mxu0
        %v1193 = vadd.f32 %v1043, %v1155
        %v1194 = vadd.f32 %v1044, %v1160
        %v1195 = vadd.f32 %v1045, %v1165
        %v1196 = vadd.f32 %v1046, %v1170
        %v1197 = vadd.f32 %v1047, %v1175
        %v1198 = vadd.f32 %v1048, %v1180
        %v1199 = vadd.f32 %v1049, %v1185
        %v1200 = vadd.f32 %v1050, %v1190
        %v1201 = vld [vmem:[%s456 + $0x9] sm:$0xff]
        %v1202 = vld [vmem:[%s456 + $0x21] sm:$0xff]
        %v1203 = vld [vmem:[%s456 + $0x39] sm:$0xff]
        %v1204 = vld [vmem:[%s456 + $0x51] sm:$0xff]
        %v1205 = vld [vmem:[%s456 + $0x69] sm:$0xff]
        %v1206 = vld [vmem:[%s456 + $0x81] sm:$0xff]
        %v1207 = vld [vmem:[%s456 + $0x99] sm:$0xff]
        %v1208 = vld [vmem:[%s456 + $0xb1] sm:$0xff]
        %s1209 = scalar_lea.vmem %s3, 20
        %v1210 = vld [vmem:[%s1209] sm:$0xf]
        %v1212 = vsel %vm434, %v1201, 0
        %v1215 = vsel %vm434, %v1202, 0
        %v1218 = vsel %vm434, %v1203, 0
        %v1221 = vsel %vm434, %v1204, 0
        %v1224 = vsel %vm434, %v1205, 0
        %v1227 = vsel %vm434, %v1206, 0
        %v1230 = vsel %vm434, %v1207, 0
        %v1233 = vsel %vm434, %v1208, 0
        %v1236 = vsel %vm510, %v1210, 0
        %1238 = vmatprep.subr.mxu0 0.0
        %1239 = vmatpush1.msra.mxu0 0.0
        %1240 = vmatprep.subr.mxu0 0.0
        %1241 = vmatpush1.msra.mxu0 0.0
        %1242 = vmatprep.subr.mxu0 0.0
        %1243 = vmatpush1.msra.mxu0 0.0
        %1244 = vmatprep.subr.mxu0 0.0
        %1245 = vmatpush1.msra.mxu0 0.0
        %1246 = vmatprep.subr.mxu0 0.0
        %1247 = vmatpush1.msra.mxu0 0.0
        %1248 = vmatprep.subr.mxu0 0.0
        %1249 = vmatpush1.msra.mxu0 0.0
        %1250 = vmatprep.subr.mxu0 0.0
        %1251 = vmatpush1.msra.mxu0 0.0
        %1252 = vmatprep.subr.mxu0 0.0
        %1253 = vmatpush1.msra.mxu0 0.0
        %1254 = vmatprep.subr.mxu0 0.0
        %1255 = vmatpush1.msra.mxu0 0.0
        %1256 = vmatprep.subr.mxu0 0.0
        %1257 = vmatpush1.msra.mxu0 0.0
        %1258 = vmatprep.subr.mxu0 0.0
        %1259 = vmatpush1.msra.mxu0 0.0
        %1260 = vmatprep.subr.mxu0 0.0
        %1261 = vmatpush1.msra.mxu0 0.0
        %1262 = vmatprep.subr.mxu0 0.0
        %1263 = vmatpush1.msra.mxu0 0.0
        %1264 = vmatprep.subr.mxu0 0.0
        %1265 = vmatpush1.msra.mxu0 0.0
        %1266 = vmatprep.subr.mxu0 0.0
        %1267 = vmatpush1.msra.mxu0 0.0
        %1268 = vmatprep.subr.mxu0 0.0
        %1269 = vmatpush1.msra.mxu0 %v1236
        %1270 = vmatprep.subr.mxu0 0.0
        %1271 = vmatpush2.msra.mxu0 0.0
        %1272 = vmatprep.subr.mxu0 0.0
        %1273 = vmatpush2.msra.mxu0 0.0
        %1274 = vmatprep.subr.mxu0 0.0
        %1275 = vmatpush2.msra.mxu0 0.0
        %1276 = vmatprep.subr.mxu0 0.0
        %1277 = vmatpush2.msra.mxu0 0.0
        %1278 = vmatprep.subr.mxu0 0.0
        %1279 = vmatpush2.msra.mxu0 0.0
        %1280 = vmatprep.subr.mxu0 0.0
        %1281 = vmatpush2.msra.mxu0 0.0
        %1282 = vmatprep.subr.mxu0 0.0
        %1283 = vmatpush2.msra.mxu0 0.0
        %1284 = vmatprep.subr.mxu0 0.0
        %1285 = vmatpush2.msra.mxu0 0.0
        %1286 = vmatprep.subr.mxu0 0.0
        %1287 = vmatpush2.msra.mxu0 0.0
        %1288 = vmatprep.subr.mxu0 0.0
        %1289 = vmatpush2.msra.mxu0 0.0
        %1290 = vmatprep.subr.mxu0 0.0
        %1291 = vmatpush2.msra.mxu0 0.0
        %1292 = vmatprep.subr.mxu0 0.0
        %1293 = vmatpush2.msra.mxu0 0.0
        %1294 = vmatprep.subr.mxu0 0.0
        %1295 = vmatpush2.msra.mxu0 0.0
        %1296 = vmatprep.subr.mxu0 0.0
        %1297 = vmatpush2.msra.mxu0 0.0
        %1298 = vmatprep.subr.mxu0 0.0
        %1299 = vmatpush2.msra.mxu0 0.0
        %1300 = vmatprep.subr.mxu0 0.0
        %1301 = vmatpush2.msra.mxu0 0.0
        %1302 = vmatprep.mubr.f32.mxu0 0.0
        %1303 = vmatmul.mubr.f32.gmra.mxu0 %v1212
        %v1304 = vpop.f32.mrf.mxu0
        %v1305 = vadd.f32 0.0, %v1304
        %v1306 = vpop.f32.mrf.mxu0
        %1307 = vmatprep.mubr.f32.mxu0 0.0
        %1308 = vmatmul.mubr.f32.gmra.mxu0 %v1215
        %v1309 = vpop.f32.mrf.mxu0
        %v1310 = vadd.f32 0.0, %v1309
        %v1311 = vpop.f32.mrf.mxu0
        %1312 = vmatprep.mubr.f32.mxu0 0.0
        %1313 = vmatmul.mubr.f32.gmra.mxu0 %v1218
        %v1314 = vpop.f32.mrf.mxu0
        %v1315 = vadd.f32 0.0, %v1314
        %v1316 = vpop.f32.mrf.mxu0
        %1317 = vmatprep.mubr.f32.mxu0 0.0
        %1318 = vmatmul.mubr.f32.gmra.mxu0 %v1221
        %v1319 = vpop.f32.mrf.mxu0
        %v1320 = vadd.f32 0.0, %v1319
        %v1321 = vpop.f32.mrf.mxu0
        %1322 = vmatprep.mubr.f32.mxu0 0.0
        %1323 = vmatmul.mubr.f32.gmra.mxu0 %v1224
        %v1324 = vpop.f32.mrf.mxu0
        %v1325 = vadd.f32 0.0, %v1324
        %v1326 = vpop.f32.mrf.mxu0
        %1327 = vmatprep.mubr.f32.mxu0 0.0
        %1328 = vmatmul.mubr.f32.gmra.mxu0 %v1227
        %v1329 = vpop.f32.mrf.mxu0
        %v1330 = vadd.f32 0.0, %v1329
        %v1331 = vpop.f32.mrf.mxu0
        %1332 = vmatprep.mubr.f32.mxu0 0.0
        %1333 = vmatmul.mubr.f32.gmra.mxu0 %v1230
        %v1334 = vpop.f32.mrf.mxu0
        %v1335 = vadd.f32 0.0, %v1334
        %v1336 = vpop.f32.mrf.mxu0
        %1337 = vmatprep.mubr.f32.mxu0 0.0
        %1338 = vmatmul.mubr.f32.gmra.mxu0 %v1233
        %v1339 = vpop.f32.mrf.mxu0
        %v1340 = vadd.f32 0.0, %v1339
        %v1341 = vpop.f32.mrf.mxu0
        %1342 = vdwg.mxu0
        %v1343 = vadd.f32 %v1193, %v1305
        %v1344 = vadd.f32 %v1194, %v1310
        %v1345 = vadd.f32 %v1195, %v1315
        %v1346 = vadd.f32 %v1196, %v1320
        %v1347 = vadd.f32 %v1197, %v1325
        %v1348 = vadd.f32 %v1198, %v1330
        %v1349 = vadd.f32 %v1199, %v1335
        %v1350 = vadd.f32 %v1200, %v1340
        %s1351 = scalar_lea.vmem [#allocation2], 48
        %v1352 = vld [vmem:[%s1351 + $0x7] sm:$0xff]
        %v1353 = vld [vmem:[%s1351 + $0x1f] sm:$0xff]
        %v1354 = vld [vmem:[%s1351 + $0x37] sm:$0xff]
        %v1355 = vld [vmem:[%s1351 + $0x4f] sm:$0xff]
        %v1356 = vld [vmem:[%s1351 + $0x67] sm:$0xff]
        %v1357 = vld [vmem:[%s1351 + $0x7f] sm:$0xff]
        %v1358 = vld [vmem:[%s1351 + $0x97] sm:$0xff]
        %v1359 = vld [vmem:[%s1351 + $0xaf] sm:$0xff]
        %s1360 = scalar_lea.vmem %s3, 24
        %v1361 = vld [vmem:[%s1360] sm:$0xf]
        %v1363 = vsel %vm434, %v1352, 0
        %v1366 = vsel %vm434, %v1353, 0
        %v1369 = vsel %vm434, %v1354, 0
        %v1372 = vsel %vm434, %v1355, 0
        %v1375 = vsel %vm434, %v1356, 0
        %v1378 = vsel %vm434, %v1357, 0
        %v1381 = vsel %vm434, %v1358, 0
        %v1384 = vsel %vm434, %v1359, 0
        %v1387 = vsel %vm510, %v1361, 0
        %1389 = vmatprep.subr.mxu0 0.0
        %1390 = vmatpush1.msra.mxu0 0.0
        %1391 = vmatprep.subr.mxu0 0.0
        %1392 = vmatpush1.msra.mxu0 0.0
        %1393 = vmatprep.subr.mxu0 0.0
        %1394 = vmatpush1.msra.mxu0 0.0
        %1395 = vmatprep.subr.mxu0 0.0
        %1396 = vmatpush1.msra.mxu0 0.0
        %1397 = vmatprep.subr.mxu0 0.0
        %1398 = vmatpush1.msra.mxu0 0.0
        %1399 = vmatprep.subr.mxu0 0.0
        %1400 = vmatpush1.msra.mxu0 0.0
        %1401 = vmatprep.subr.mxu0 0.0
        %1402 = vmatpush1.msra.mxu0 0.0
        %1403 = vmatprep.subr.mxu0 0.0
        %1404 = vmatpush1.msra.mxu0 0.0
        %1405 = vmatprep.subr.mxu0 0.0
        %1406 = vmatpush1.msra.mxu0 0.0
        %1407 = vmatprep.subr.mxu0 0.0
        %1408 = vmatpush1.msra.mxu0 0.0
        %1409 = vmatprep.subr.mxu0 0.0
        %1410 = vmatpush1.msra.mxu0 0.0
        %1411 = vmatprep.subr.mxu0 0.0
        %1412 = vmatpush1.msra.mxu0 0.0
        %1413 = vmatprep.subr.mxu0 0.0
        %1414 = vmatpush1.msra.mxu0 0.0
        %1415 = vmatprep.subr.mxu0 0.0
        %1416 = vmatpush1.msra.mxu0 0.0
        %1417 = vmatprep.subr.mxu0 0.0
        %1418 = vmatpush1.msra.mxu0 0.0
        %1419 = vmatprep.subr.mxu0 0.0
        %1420 = vmatpush1.msra.mxu0 %v1387
        %1421 = vmatprep.subr.mxu0 0.0
        %1422 = vmatpush2.msra.mxu0 0.0
        %1423 = vmatprep.subr.mxu0 0.0
        %1424 = vmatpush2.msra.mxu0 0.0
        %1425 = vmatprep.subr.mxu0 0.0
        %1426 = vmatpush2.msra.mxu0 0.0
        %1427 = vmatprep.subr.mxu0 0.0
        %1428 = vmatpush2.msra.mxu0 0.0
        %1429 = vmatprep.subr.mxu0 0.0
        %1430 = vmatpush2.msra.mxu0 0.0
        %1431 = vmatprep.subr.mxu0 0.0
        %1432 = vmatpush2.msra.mxu0 0.0
        %1433 = vmatprep.subr.mxu0 0.0
        %1434 = vmatpush2.msra.mxu0 0.0
        %1435 = vmatprep.subr.mxu0 0.0
        %1436 = vmatpush2.msra.mxu0 0.0
        %1437 = vmatprep.subr.mxu0 0.0
        %1438 = vmatpush2.msra.mxu0 0.0
        %1439 = vmatprep.subr.mxu0 0.0
        %1440 = vmatpush2.msra.mxu0 0.0
        %1441 = vmatprep.subr.mxu0 0.0
        %1442 = vmatpush2.msra.mxu0 0.0
        %1443 = vmatprep.subr.mxu0 0.0
        %1444 = vmatpush2.msra.mxu0 0.0
        %1445 = vmatprep.subr.mxu0 0.0
        %1446 = vmatpush2.msra.mxu0 0.0
        %1447 = vmatprep.subr.mxu0 0.0
        %1448 = vmatpush2.msra.mxu0 0.0
        %1449 = vmatprep.subr.mxu0 0.0
        %1450 = vmatpush2.msra.mxu0 0.0
        %1451 = vmatprep.subr.mxu0 0.0
        %1452 = vmatpush2.msra.mxu0 0.0
        %1453 = vmatprep.mubr.f32.mxu0 0.0
        %1454 = vmatmul.mubr.f32.gmra.mxu0 %v1363
        %v1455 = vpop.f32.mrf.mxu0
        %v1456 = vadd.f32 0.0, %v1455
        %v1457 = vpop.f32.mrf.mxu0
        %1458 = vmatprep.mubr.f32.mxu0 0.0
        %1459 = vmatmul.mubr.f32.gmra.mxu0 %v1366
        %v1460 = vpop.f32.mrf.mxu0
        %v1461 = vadd.f32 0.0, %v1460
        %v1462 = vpop.f32.mrf.mxu0
        %1463 = vmatprep.mubr.f32.mxu0 0.0
        %1464 = vmatmul.mubr.f32.gmra.mxu0 %v1369
        %v1465 = vpop.f32.mrf.mxu0
        %v1466 = vadd.f32 0.0, %v1465
        %v1467 = vpop.f32.mrf.mxu0
        %1468 = vmatprep.mubr.f32.mxu0 0.0
        %1469 = vmatmul.mubr.f32.gmra.mxu0 %v1372
        %v1470 = vpop.f32.mrf.mxu0
        %v1471 = vadd.f32 0.0, %v1470
        %v1472 = vpop.f32.mrf.mxu0
        %1473 = vmatprep.mubr.f32.mxu0 0.0
        %1474 = vmatmul.mubr.f32.gmra.mxu0 %v1375
        %v1475 = vpop.f32.mrf.mxu0
        %v1476 = vadd.f32 0.0, %v1475
        %v1477 = vpop.f32.mrf.mxu0
        %1478 = vmatprep.mubr.f32.mxu0 0.0
        %1479 = vmatmul.mubr.f32.gmra.mxu0 %v1378
        %v1480 = vpop.f32.mrf.mxu0
        %v1481 = vadd.f32 0.0, %v1480
        %v1482 = vpop.f32.mrf.mxu0
        %1483 = vmatprep.mubr.f32.mxu0 0.0
        %1484 = vmatmul.mubr.f32.gmra.mxu0 %v1381
        %v1485 = vpop.f32.mrf.mxu0
        %v1486 = vadd.f32 0.0, %v1485
        %v1487 = vpop.f32.mrf.mxu0
        %1488 = vmatprep.mubr.f32.mxu0 0.0
        %1489 = vmatmul.mubr.f32.gmra.mxu0 %v1384
        %v1490 = vpop.f32.mrf.mxu0
        %v1491 = vadd.f32 0.0, %v1490
        %v1492 = vpop.f32.mrf.mxu0
        %1493 = vdwg.mxu0
        %v1494 = vadd.f32 %v1343, %v1456
        %v1495 = vadd.f32 %v1344, %v1461
        %v1496 = vadd.f32 %v1345, %v1466
        %v1497 = vadd.f32 %v1346, %v1471
        %v1498 = vadd.f32 %v1347, %v1476
        %v1499 = vadd.f32 %v1348, %v1481
        %v1500 = vadd.f32 %v1349, %v1486
        %v1501 = vadd.f32 %v1350, %v1491
        %v1502 = vld [vmem:[%s1351 + $0x8] sm:$0xff]
        %v1503 = vld [vmem:[%s1351 + $0x20] sm:$0xff]
        %v1504 = vld [vmem:[%s1351 + $0x38] sm:$0xff]
        %v1505 = vld [vmem:[%s1351 + $0x50] sm:$0xff]
        %v1506 = vld [vmem:[%s1351 + $0x68] sm:$0xff]
        %v1507 = vld [vmem:[%s1351 + $0x80] sm:$0xff]
        %v1508 = vld [vmem:[%s1351 + $0x98] sm:$0xff]
        %v1509 = vld [vmem:[%s1351 + $0xb0] sm:$0xff]
        %s1510 = scalar_lea.vmem %s3, 28
        %v1511 = vld [vmem:[%s1510] sm:$0xf]
        %v1513 = vsel %vm434, %v1502, 0
        %v1516 = vsel %vm434, %v1503, 0
        %v1519 = vsel %vm434, %v1504, 0
        %v1522 = vsel %vm434, %v1505, 0
        %v1525 = vsel %vm434, %v1506, 0
        %v1528 = vsel %vm434, %v1507, 0
        %v1531 = vsel %vm434, %v1508, 0
        %v1534 = vsel %vm434, %v1509, 0
        %v1537 = vsel %vm510, %v1511, 0
        %1539 = vmatprep.subr.mxu0 0.0
        %1540 = vmatpush1.msra.mxu0 0.0
        %1541 = vmatprep.subr.mxu0 0.0
        %1542 = vmatpush1.msra.mxu0 0.0
        %1543 = vmatprep.subr.mxu0 0.0
        %1544 = vmatpush1.msra.mxu0 0.0
        %1545 = vmatprep.subr.mxu0 0.0
        %1546 = vmatpush1.msra.mxu0 0.0
        %1547 = vmatprep.subr.mxu0 0.0
        %1548 = vmatpush1.msra.mxu0 0.0
        %1549 = vmatprep.subr.mxu0 0.0
        %1550 = vmatpush1.msra.mxu0 0.0
        %1551 = vmatprep.subr.mxu0 0.0
        %1552 = vmatpush1.msra.mxu0 0.0
        %1553 = vmatprep.subr.mxu0 0.0
        %1554 = vmatpush1.msra.mxu0 0.0
        %1555 = vmatprep.subr.mxu0 0.0
        %1556 = vmatpush1.msra.mxu0 0.0
        %1557 = vmatprep.subr.mxu0 0.0
        %1558 = vmatpush1.msra.mxu0 0.0
        %1559 = vmatprep.subr.mxu0 0.0
        %1560 = vmatpush1.msra.mxu0 0.0
        %1561 = vmatprep.subr.mxu0 0.0
        %1562 = vmatpush1.msra.mxu0 0.0
        %1563 = vmatprep.subr.mxu0 0.0
        %1564 = vmatpush1.msra.mxu0 0.0
        %1565 = vmatprep.subr.mxu0 0.0
        %1566 = vmatpush1.msra.mxu0 0.0
        %1567 = vmatprep.subr.mxu0 0.0
        %1568 = vmatpush1.msra.mxu0 0.0
        %1569 = vmatprep.subr.mxu0 0.0
        %1570 = vmatpush1.msra.mxu0 %v1537
        %1571 = vmatprep.subr.mxu0 0.0
        %1572 = vmatpush2.msra.mxu0 0.0
        %1573 = vmatprep.subr.mxu0 0.0
        %1574 = vmatpush2.msra.mxu0 0.0
        %1575 = vmatprep.subr.mxu0 0.0
        %1576 = vmatpush2.msra.mxu0 0.0
        %1577 = vmatprep.subr.mxu0 0.0
        %1578 = vmatpush2.msra.mxu0 0.0
        %1579 = vmatprep.subr.mxu0 0.0
        %1580 = vmatpush2.msra.mxu0 0.0
        %1581 = vmatprep.subr.mxu0 0.0
        %1582 = vmatpush2.msra.mxu0 0.0
        %1583 = vmatprep.subr.mxu0 0.0
        %1584 = vmatpush2.msra.mxu0 0.0
        %1585 = vmatprep.subr.mxu0 0.0
        %1586 = vmatpush2.msra.mxu0 0.0
        %1587 = vmatprep.subr.mxu0 0.0
        %1588 = vmatpush2.msra.mxu0 0.0
        %1589 = vmatprep.subr.mxu0 0.0
        %1590 = vmatpush2.msra.mxu0 0.0
        %1591 = vmatprep.subr.mxu0 0.0
        %1592 = vmatpush2.msra.mxu0 0.0
        %1593 = vmatprep.subr.mxu0 0.0
        %1594 = vmatpush2.msra.mxu0 0.0
        %1595 = vmatprep.subr.mxu0 0.0
        %1596 = vmatpush2.msra.mxu0 0.0
        %1597 = vmatprep.subr.mxu0 0.0
        %1598 = vmatpush2.msra.mxu0 0.0
        %1599 = vmatprep.subr.mxu0 0.0
        %1600 = vmatpush2.msra.mxu0 0.0
        %1601 = vmatprep.subr.mxu0 0.0
        %1602 = vmatpush2.msra.mxu0 0.0
        %1603 = vmatprep.mubr.f32.mxu0 0.0
        %1604 = vmatmul.mubr.f32.gmra.mxu0 %v1513
        %v1605 = vpop.f32.mrf.mxu0
        %v1606 = vadd.f32 0.0, %v1605
        %v1607 = vpop.f32.mrf.mxu0
        %1608 = vmatprep.mubr.f32.mxu0 0.0
        %1609 = vmatmul.mubr.f32.gmra.mxu0 %v1516
        %v1610 = vpop.f32.mrf.mxu0
        %v1611 = vadd.f32 0.0, %v1610
        %v1612 = vpop.f32.mrf.mxu0
        %1613 = vmatprep.mubr.f32.mxu0 0.0
        %1614 = vmatmul.mubr.f32.gmra.mxu0 %v1519
        %v1615 = vpop.f32.mrf.mxu0
        %v1616 = vadd.f32 0.0, %v1615
        %v1617 = vpop.f32.mrf.mxu0
        %1618 = vmatprep.mubr.f32.mxu0 0.0
        %1619 = vmatmul.mubr.f32.gmra.mxu0 %v1522
        %v1620 = vpop.f32.mrf.mxu0
        %v1621 = vadd.f32 0.0, %v1620
        %v1622 = vpop.f32.mrf.mxu0
        %1623 = vmatprep.mubr.f32.mxu0 0.0
        %1624 = vmatmul.mubr.f32.gmra.mxu0 %v1525
        %v1625 = vpop.f32.mrf.mxu0
        %v1626 = vadd.f32 0.0, %v1625
        %v1627 = vpop.f32.mrf.mxu0
        %1628 = vmatprep.mubr.f32.mxu0 0.0
        %1629 = vmatmul.mubr.f32.gmra.mxu0 %v1528
        %v1630 = vpop.f32.mrf.mxu0
        %v1631 = vadd.f32 0.0, %v1630
        %v1632 = vpop.f32.mrf.mxu0
        %1633 = vmatprep.mubr.f32.mxu0 0.0
        %1634 = vmatmul.mubr.f32.gmra.mxu0 %v1531
        %v1635 = vpop.f32.mrf.mxu0
        %v1636 = vadd.f32 0.0, %v1635
        %v1637 = vpop.f32.mrf.mxu0
        %1638 = vmatprep.mubr.f32.mxu0 0.0
        %1639 = vmatmul.mubr.f32.gmra.mxu0 %v1534
        %v1640 = vpop.f32.mrf.mxu0
        %v1641 = vadd.f32 0.0, %v1640
        %v1642 = vpop.f32.mrf.mxu0
        %1643 = vdwg.mxu0
        %v1644 = vadd.f32 %v1494, %v1606
        %v1645 = vadd.f32 %v1495, %v1611
        %v1646 = vadd.f32 %v1496, %v1616
        %v1647 = vadd.f32 %v1497, %v1621
        %v1648 = vadd.f32 %v1498, %v1626
        %v1649 = vadd.f32 %v1499, %v1631
        %v1650 = vadd.f32 %v1500, %v1636
        %v1651 = vadd.f32 %v1501, %v1641
        %v1652 = vld [vmem:[%s1351 + $0x9] sm:$0xff]
        %v1653 = vld [vmem:[%s1351 + $0x21] sm:$0xff]
        %v1654 = vld [vmem:[%s1351 + $0x39] sm:$0xff]
        %v1655 = vld [vmem:[%s1351 + $0x51] sm:$0xff]
        %v1656 = vld [vmem:[%s1351 + $0x69] sm:$0xff]
        %v1657 = vld [vmem:[%s1351 + $0x81] sm:$0xff]
        %v1658 = vld [vmem:[%s1351 + $0x99] sm:$0xff]
        %v1659 = vld [vmem:[%s1351 + $0xb1] sm:$0xff]
        %s1660 = scalar_lea.vmem %s3, 32
        %v1661 = vld [vmem:[%s1660] sm:$0xf]
        %v1663 = vsel %vm434, %v1652, 0
        %v1666 = vsel %vm434, %v1653, 0
        %v1669 = vsel %vm434, %v1654, 0
        %v1672 = vsel %vm434, %v1655, 0
        %v1675 = vsel %vm434, %v1656, 0
        %v1678 = vsel %vm434, %v1657, 0
        %v1681 = vsel %vm434, %v1658, 0
        %v1684 = vsel %vm434, %v1659, 0
        %v1687 = vsel %vm510, %v1661, 0
        %1689 = vmatprep.subr.mxu0 0.0
        %1690 = vmatpush1.msra.mxu0 0.0
        %1691 = vmatprep.subr.mxu0 0.0
        %1692 = vmatpush1.msra.mxu0 0.0
        %1693 = vmatprep.subr.mxu0 0.0
        %1694 = vmatpush1.msra.mxu0 0.0
        %1695 = vmatprep.subr.mxu0 0.0
        %1696 = vmatpush1.msra.mxu0 0.0
        %1697 = vmatprep.subr.mxu0 0.0
        %1698 = vmatpush1.msra.mxu0 0.0
        %1699 = vmatprep.subr.mxu0 0.0
        %1700 = vmatpush1.msra.mxu0 0.0
        %1701 = vmatprep.subr.mxu0 0.0
        %1702 = vmatpush1.msra.mxu0 0.0
        %1703 = vmatprep.subr.mxu0 0.0
        %1704 = vmatpush1.msra.mxu0 0.0
        %1705 = vmatprep.subr.mxu0 0.0
        %1706 = vmatpush1.msra.mxu0 0.0
        %1707 = vmatprep.subr.mxu0 0.0
        %1708 = vmatpush1.msra.mxu0 0.0
        %1709 = vmatprep.subr.mxu0 0.0
        %1710 = vmatpush1.msra.mxu0 0.0
        %1711 = vmatprep.subr.mxu0 0.0
        %1712 = vmatpush1.msra.mxu0 0.0
        %1713 = vmatprep.subr.mxu0 0.0
        %1714 = vmatpush1.msra.mxu0 0.0
        %1715 = vmatprep.subr.mxu0 0.0
        %1716 = vmatpush1.msra.mxu0 0.0
        %1717 = vmatprep.subr.mxu0 0.0
        %1718 = vmatpush1.msra.mxu0 0.0
        %1719 = vmatprep.subr.mxu0 0.0
        %1720 = vmatpush1.msra.mxu0 %v1687
        %1721 = vmatprep.subr.mxu0 0.0
        %1722 = vmatpush2.msra.mxu0 0.0
        %1723 = vmatprep.subr.mxu0 0.0
        %1724 = vmatpush2.msra.mxu0 0.0
        %1725 = vmatprep.subr.mxu0 0.0
        %1726 = vmatpush2.msra.mxu0 0.0
        %1727 = vmatprep.subr.mxu0 0.0
        %1728 = vmatpush2.msra.mxu0 0.0
        %1729 = vmatprep.subr.mxu0 0.0
        %1730 = vmatpush2.msra.mxu0 0.0
        %1731 = vmatprep.subr.mxu0 0.0
        %1732 = vmatpush2.msra.mxu0 0.0
        %1733 = vmatprep.subr.mxu0 0.0
        %1734 = vmatpush2.msra.mxu0 0.0
        %1735 = vmatprep.subr.mxu0 0.0
        %1736 = vmatpush2.msra.mxu0 0.0
        %1737 = vmatprep.subr.mxu0 0.0
        %1738 = vmatpush2.msra.mxu0 0.0
        %1739 = vmatprep.subr.mxu0 0.0
        %1740 = vmatpush2.msra.mxu0 0.0
        %1741 = vmatprep.subr.mxu0 0.0
        %1742 = vmatpush2.msra.mxu0 0.0
        %1743 = vmatprep.subr.mxu0 0.0
        %1744 = vmatpush2.msra.mxu0 0.0
        %1745 = vmatprep.subr.mxu0 0.0
        %1746 = vmatpush2.msra.mxu0 0.0
        %1747 = vmatprep.subr.mxu0 0.0
        %1748 = vmatpush2.msra.mxu0 0.0
        %1749 = vmatprep.subr.mxu0 0.0
        %1750 = vmatpush2.msra.mxu0 0.0
        %1751 = vmatprep.subr.mxu0 0.0
        %1752 = vmatpush2.msra.mxu0 0.0
        %1753 = vmatprep.mubr.f32.mxu0 0.0
        %1754 = vmatmul.mubr.f32.gmra.mxu0 %v1663
        %v1755 = vpop.f32.mrf.mxu0
        %v1756 = vadd.f32 0.0, %v1755
        %v1757 = vpop.f32.mrf.mxu0
        %1758 = vmatprep.mubr.f32.mxu0 0.0
        %1759 = vmatmul.mubr.f32.gmra.mxu0 %v1666
        %v1760 = vpop.f32.mrf.mxu0
        %v1761 = vadd.f32 0.0, %v1760
        %v1762 = vpop.f32.mrf.mxu0
        %1763 = vmatprep.mubr.f32.mxu0 0.0
        %1764 = vmatmul.mubr.f32.gmra.mxu0 %v1669
        %v1765 = vpop.f32.mrf.mxu0
        %v1766 = vadd.f32 0.0, %v1765
        %v1767 = vpop.f32.mrf.mxu0
        %1768 = vmatprep.mubr.f32.mxu0 0.0
        %1769 = vmatmul.mubr.f32.gmra.mxu0 %v1672
        %v1770 = vpop.f32.mrf.mxu0
        %v1771 = vadd.f32 0.0, %v1770
        %v1772 = vpop.f32.mrf.mxu0
        %1773 = vmatprep.mubr.f32.mxu0 0.0
        %1774 = vmatmul.mubr.f32.gmra.mxu0 %v1675
        %v1775 = vpop.f32.mrf.mxu0
        %v1776 = vadd.f32 0.0, %v1775
        %v1777 = vpop.f32.mrf.mxu0
        %1778 = vmatprep.mubr.f32.mxu0 0.0
        %1779 = vmatmul.mubr.f32.gmra.mxu0 %v1678
        %v1780 = vpop.f32.mrf.mxu0
        %v1781 = vadd.f32 0.0, %v1780
        %v1782 = vpop.f32.mrf.mxu0
        %1783 = vmatprep.mubr.f32.mxu0 0.0
        %1784 = vmatmul.mubr.f32.gmra.mxu0 %v1681
        %v1785 = vpop.f32.mrf.mxu0
        %v1786 = vadd.f32 0.0, %v1785
        %v1787 = vpop.f32.mrf.mxu0
        %1788 = vmatprep.mubr.f32.mxu0 0.0
        %1789 = vmatmul.mubr.f32.gmra.mxu0 %v1684
        %v1790 = vpop.f32.mrf.mxu0
        %v1791 = vadd.f32 0.0, %v1790
        %v1792 = vpop.f32.mrf.mxu0
        %1793 = vdwg.mxu0
        %v1794 = vadd.f32 %v1644, %v1756
        %v1795 = vadd.f32 %v1645, %v1761
        %v1796 = vadd.f32 %v1646, %v1766
        %v1797 = vadd.f32 %v1647, %v1771
        %v1798 = vadd.f32 %v1648, %v1776
        %v1799 = vadd.f32 %v1649, %v1781
        %v1800 = vadd.f32 %v1650, %v1786
        %v1801 = vadd.f32 %v1651, %v1791
        %1802 = vst [vmem:[%s307] sm:$0xff] %v1794
        %1803 = vst [vmem:[%s307 + $0x8] sm:$0xff] %v1795
        %1804 = vst [vmem:[%s307 + $0x10] sm:$0xff] %v1796
        %1805 = vst [vmem:[%s307 + $0x18] sm:$0xff] %v1797
        %1806 = vst [vmem:[%s307 + $0x20] sm:$0xff] %v1798
        %1807 = vst [vmem:[%s307 + $0x28] sm:$0xff] %v1799
        %1808 = vst [vmem:[%s307 + $0x30] sm:$0xff] %v1800
        %1809 = vst [vmem:[%s307 + $0x38] sm:$0xff] %v1801
        %s1810 = sand.u32 %s161, 1
        %s1811 = scalar_lea.sflag [#allocation4], %s1810
        %s1812 = sand.u32 %s161, 1
        %s1813 = smul.addr %s1812, 64
        %s1814 = scalar_lea.vmem [#allocation3], %s1813
        // Predicated region
        $region37: #{tpu_custom_call.1} parent=35 // pred_check
          %p1815 = pneg %p171
        $region38: #{tpu_custom_call.1} parent=35 // pred_check_branch
          %1817 = sbr.rel (%p1815) target = $region40
        $region39: #{tpu_custom_call.1} parent=35 // pred_region
          %s1818 = smul.u32 8, %s23
          %s1820 = ssub.s32 1024, 1024
          %1821 = vsyncadd %s1811, %s1820
          %s1822 = smul.addr %s22, 8
          %s1823 = sadd.s32 %s1818, %s1822
          %s1824 = smul.addr %s1823, 128
          %s1825 = scalar_lea.hbm %s4, %s1824
          %s1826 = sshll.u32 %s1814, 4
          %s1827 = int_to_ptr.vmem [resolvable:$true] %s1826
          %1832 = dma.vmem_to_hbm [thread:$0]  %s1827, 1024, %s1825, %s1811, 128, 128, 8
        $region40: #{tpu_custom_call.1} parent=35 // pred_fallthru
          _
      $region36: #{tpu_custom_call.1} parent=5 // pred_fallthru
        _
      %p1833 = scmp.le.s32.totalorder 2, %s13
      // Predicated region
      $region41: #{tpu_custom_call.1} parent=5 // pred_check
        %p1834 = pneg %p1833
      $region42: #{tpu_custom_call.1} parent=5 // pred_check_branch
        %1836 = sbr.rel (%p1834) target = $region44
      $region43: #{tpu_custom_call.1} parent=5 // pred_region
        %s1837 = ssub.s32 %s13, 2
        // Predicated region
        $region45: #{tpu_custom_call.1} parent=43 // pred_check
          %p1838 = pneg %p177
        $region46: #{tpu_custom_call.1} parent=43 // pred_check_branch
          %1840 = sbr.rel (%p1838) target = $region48
        $region47: #{tpu_custom_call.1} parent=43 // pred_region
          %s1841 = sand.u32 %s162, 1
          %s1842 = scalar_lea.sflag [#allocation4], %s1841
          %s1843 = sand.u32 %s162, 1
          %s1844 = smul.addr %s1843, 64
          %s1845 = scalar_lea.vmem [#allocation3], %s1844
          %1846 = dma.done %s1842, 1024
        $region48: #{tpu_custom_call.1} parent=43 // pred_fallthru
          _
      $region44: #{tpu_custom_call.1} parent=5 // pred_fallthru
        _
    $region6: #{tpu_custom_call.1} parent=1 // loop_footer
      %s17 = sadd.s32 1, %s13
    $region7: #{tpu_custom_call.1} parent=1 // loop_footer_branch
      %12 = sbr.rel target = $region3
    $region8: #{tpu_custom_call.1} parent=1 // loop_exit
      _
    %1847 = vsyncpa [#allocation4], 1
    %s1848 = scalar_lea.sflag [#allocation4], 1
    %1849 = vsyncpa %s1848, 1

</llo_original>
